<compile_context>
chip_gen: v7x
topology: tpu7x:2x2x1
jax: 0.10.0
libtpu: 0.0.40
codegen_flags: <defaults>
</compile_context>

<pallas_src>
import jax
import jax.numpy as jnp
from jax.experimental import pallas as pl
from jax.experimental.pallas import tpu as pltpu

# ----- synthetic config (stands in for config.model.cnn.*) -----
N_CHANNELS_1 = 4
N_CHANNELS_2 = 8
HIDDEN_DIM = 32
KERNEL_SIZE = 3
PAD = KERNEL_SIZE // 2
INPUT_CHANNELS = 1
OUTPUT_DIM = 10
FLAT_DIM = N_CHANNELS_2 * 7 * 7

# Lane-dense padded widths: every kernel output's last dim is 128 so stores are
# unmasked full-lane vst (biggest measured lever per review, esp. on v5e).
LANE = 128
COUT_PAD = LANE      # conv out channels 4/8 -> 128 (zero weight/bias columns)
HID_PAD = LANE       # hidden 32 -> 128
OUT_PAD = LANE       # logits 10 -> 128

# Tile sizes: chosen so double-buffered input tiles stay well under v7x's 64 MiB VMEM
# (conv patch tile: 4 * 1024 rows * 128 lanes * 4 B = 2 MiB per buffer).
MAX_M_TILE = 1024    # pooled-output rows per conv grid step (multiple of 8)
MAX_N_TILE = 256     # batch rows per MLP grid step (multiple of 8)

# Matmul input dtype. Setting this to jnp.bfloat16 halves HBM/DMA bytes and runs the
# MXU at full rate on v6e/v7x (accumulation stays f32 via preferred_element_type);
# kept f32 here so the in-script check against the f32 XLA reference is tight.
MXU_DTYPE = jnp.float32


def _round_up(x, m):
    return (x + m - 1) // m * m


# ---------------- Pallas kernels ----------------

def conv_relu_pool_kernel(p_ref, w_ref, b_ref, o_ref):
    """Fused conv (im2col matmul) + bias + ReLU + 2x2 max-pool for one M-tile.

    p_ref: (4, Mt, KD)     -- one patch slab per 2x2 pooling offset (KD = Cin*K*K)
    w_ref: (KD, COUT_PAD)  -- weight matrix, zero-padded to 128 output lanes
    b_ref: (1, COUT_PAD)   -- bias, zero-padded
    o_ref: (Mt, COUT_PAD)
    """
    w = w_ref[...]
    four, mt, kd = p_ref.shape
    cpad = w.shape[1]
    # Collapse the 4 pooling-offset matmuls into ONE MXU matmul (single weight
    # push / drain instead of 4 tiny matmul sequences).
    p = p_ref[...].reshape(four * mt, kd)
    y = jnp.dot(p, w, preferred_element_type=jnp.float32)      # (4*Mt, COUT_PAD)
    y = jnp.max(y.reshape(four, mt, cpad), axis=0)              # 2x2 max-pool
    # bias + ReLU applied once, after the max (exact: ReLU monotone, bias shared).
    o_ref[...] = jnp.maximum(y + b_ref[...], 0.0)


def mlp_kernel(x_ref, w1_ref, b1_ref, w2_ref, b2_ref, o_ref):
    """fc1 + ReLU + fc2 for one batch tile (all matmul N-dims padded to 128 lanes).

    x_ref: (Nt, FLAT), w1_ref: (FLAT, HID_PAD), b1_ref: (1, HID_PAD),
    w2_ref: (HID_PAD, OUT_PAD), b2_ref: (1, OUT_PAD), o_ref: (Nt, OUT_PAD)
    """
    h = jnp.dot(x_ref[...], w1_ref[...], preferred_element_type=jnp.float32) + b1_ref[...]
    h = jnp.maximum(h, 0.0).astype(w2_ref.dtype)
    o_ref[...] = jnp.dot(h, w2_ref[...], preferred_element_type=jnp.float32) + b2_ref[...]


# ---------------- glue (padding / im2col / reshapes) ----------------

def _im2col_pooled(x_nhwc, ksize):
    """Return (4, N*H2*W2, Cin*K*K) patches, flatten order (ci, kh, kw),
    one patch matrix per 2x2-pooling offset (di, dj).

    # TODO(synk): move this patch extraction into the Pallas kernel (DMA the padded
    # NHWC tile once per grid step and build the 9 shifted views in VMEM) to avoid
    # materializing ~9x the input volume in HBM per conv layer.
    """
    N, H, W, Cin = x_nhwc.shape
    H2, W2 = H // 2, W // 2
    xp = jnp.pad(x_nhwc, ((0, 0), (PAD, PAD), (PAD, PAD), (0, 0)))
    all_p = []
    for (di, dj) in ((0, 0), (0, 1), (1, 0), (1, 1)):
        slabs = []
        for kh in range(ksize):
            for kw in range(ksize):
                s = xp[:, di + kh: di + kh + 2 * H2: 2,
                          dj + kw: dj + kw + 2 * W2: 2, :]
                slabs.append(s)                              # (N, H2, W2, Cin)
        patch = jnp.stack(slabs, axis=0)                     # (K*K, N, H2, W2, Cin)
        patch = jnp.transpose(patch, (1, 2, 3, 4, 0))        # (N, H2, W2, Cin, K*K)
        all_p.append(patch.reshape(N * H2 * W2, Cin * ksize * ksize))
    return jnp.stack(all_p, axis=0)


def conv_relu_pool(x_nhwc, w_oihw, b):
    N, H, W, Cin = x_nhwc.shape
    Cout = w_oihw.shape[0]
    H2, W2 = H // 2, W // 2
    KD = Cin * KERNEL_SIZE * KERNEL_SIZE
    M = N * H2 * W2
    M_pad = _round_up(M, 8)                        # keep M-tiles a sublane multiple
    Mt = M_pad if M_pad <= MAX_M_TILE else MAX_M_TILE
    grid = (pl.cdiv(M_pad, Mt),)

    patches = _im2col_pooled(x_nhwc, KERNEL_SIZE)  # (4, M, KD)
    if M_pad != M:
        patches = jnp.pad(patches, ((0, 0), (0, M_pad - M), (0, 0)))
    patches = patches.astype(MXU_DTYPE)

    wmat = w_oihw.reshape(Cout, KD).T                                     # (KD, Cout)
    wmat = jnp.pad(wmat, ((0, 0), (0, COUT_PAD - Cout))).astype(MXU_DTYPE)
    bmat = jnp.pad(b.reshape(1, Cout).astype(jnp.float32),
                   ((0, 0), (0, COUT_PAD - Cout)))

    out = pl.pallas_call(
        conv_relu_pool_kernel,
        out_shape=jax.ShapeDtypeStruct((M_pad, COUT_PAD), jnp.float32),
        grid=grid,
        in_specs=[
            pl.BlockSpec((4, Mt, KD), lambda i: (0, i, 0)),
            pl.BlockSpec((KD, COUT_PAD), lambda i: (0, 0)),   # resident across grid
            pl.BlockSpec((1, COUT_PAD), lambda i: (0, 0)),    # resident across grid
        ],
        out_specs=pl.BlockSpec((Mt, COUT_PAD), lambda i: (i, 0)),
        compiler_params=pltpu.CompilerParams(dimension_semantics=("parallel",)),
    )(patches, wmat, bmat)
    return out[:M, :Cout].reshape(N, H2, W2, Cout)


def mlp(x_flat, w1_hwc, b1, w2, b2):
    """x_flat is in (h, w, c) flatten order; w1_hwc has columns pre-permuted to match."""
    N, flat = x_flat.shape
    Nt = N if N <= MAX_N_TILE else MAX_N_TILE
    grid = (pl.cdiv(N, Nt),)

    w1p = jnp.pad(w1_hwc.T, ((0, 0), (0, HID_PAD - HIDDEN_DIM))).astype(MXU_DTYPE)      # (FLAT, 128)
    b1p = jnp.pad(b1.reshape(1, -1).astype(jnp.float32), ((0, 0), (0, HID_PAD - HIDDEN_DIM)))
    w2p = jnp.pad(w2.T, ((0, HID_PAD - HIDDEN_DIM), (0, OUT_PAD - OUTPUT_DIM))).astype(MXU_DTYPE)  # (128, 128)
    b2p = jnp.pad(b2.reshape(1, -1).astype(jnp.float32), ((0, 0), (0, OUT_PAD - OUTPUT_DIM)))

    out = pl.pallas_call(
        mlp_kernel,
        out_shape=jax.ShapeDtypeStruct((N, OUT_PAD), jnp.float32),
        grid=grid,
        in_specs=[
            pl.BlockSpec((Nt, flat), lambda i: (i, 0)),
            pl.BlockSpec((flat, HID_PAD), lambda i: (0, 0)),
            pl.BlockSpec((1, HID_PAD), lambda i: (0, 0)),
            pl.BlockSpec((HID_PAD, OUT_PAD), lambda i: (0, 0)),
            pl.BlockSpec((1, OUT_PAD), lambda i: (0, 0)),
        ],
        out_specs=pl.BlockSpec((Nt, OUT_PAD), lambda i: (i, 0)),
        compiler_params=pltpu.CompilerParams(dimension_semantics=("parallel",)),
    )(x_flat.astype(MXU_DTYPE), w1p, b1p, w2p, b2p)
    return out[:, :OUTPUT_DIM]


def cnn_forward(x_nchw, params):
    x = jnp.transpose(x_nchw, (0, 2, 3, 1))                          # NCHW -> NHWC
    x = conv_relu_pool(x, params["conv1_w"], params["conv1_b"])      # (N, 14, 14, C1)
    x = conv_relu_pool(x, params["conv2_w"], params["conv2_b"])      # (N, 7, 7, C2)
    # Fold torch's NCHW flatten (x.view(-1, C2*7*7)) into fc1's weight columns instead
    # of transposing the activations back to NCHW (saves an HBM round trip).
    x_flat = x.reshape(x.shape[0], FLAT_DIM)                         # (h, w, c) order
    w1_hwc = params["fc1_w"].reshape(HIDDEN_DIM, N_CHANNELS_2, 7, 7)
    w1_hwc = jnp.transpose(w1_hwc, (0, 2, 3, 1)).reshape(HIDDEN_DIM, FLAT_DIM)
    return mlp(x_flat, w1_hwc, params["fc1_b"], params["fc2_w"], params["fc2_b"])


# ---------------- pure-JAX reference for verification ----------------

def cnn_reference(x_nchw, p):
    dn = ("NCHW", "OIHW", "NCHW")

    def conv(x, w, b):
        y = jax.lax.conv_general_dilated(x, w, (1, 1), [(PAD, PAD), (PAD, PAD)],
                                         dimension_numbers=dn)
        return y + b[None, :, None, None]

    def pool(x):
        return jax.lax.reduce_window(x, -jnp.inf, jax.lax.max,
                                     (1, 1, 2, 2), (1, 1, 2, 2), "VALID")

    x = pool(jnp.maximum(conv(x_nchw, p["conv1_w"], p["conv1_b"]), 0.0))
    x = pool(jnp.maximum(conv(x, p["conv2_w"], p["conv2_b"]), 0.0))
    x = x.reshape(x.shape[0], FLAT_DIM)
    x = jnp.maximum(x @ p["fc1_w"].T + p["fc1_b"], 0.0)
    return x @ p["fc2_w"].T + p["fc2_b"]


def init_params(key):
    ks = jax.random.split(key, 8)
    s = 0.1
    return {
        "conv1_w": s * jax.random.normal(ks[0], (N_CHANNELS_1, INPUT_CHANNELS, KERNEL_SIZE, KERNEL_SIZE), jnp.float32),
        "conv1_b": s * jax.random.normal(ks[1], (N_CHANNELS_1,), jnp.float32),
        "conv2_w": s * jax.random.normal(ks[2], (N_CHANNELS_2, N_CHANNELS_1, KERNEL_SIZE, KERNEL_SIZE), jnp.float32),
        "conv2_b": s * jax.random.normal(ks[3], (N_CHANNELS_2,), jnp.float32),
        "fc1_w": s * jax.random.normal(ks[4], (HIDDEN_DIM, FLAT_DIM), jnp.float32),
        "fc1_b": s * jax.random.normal(ks[5], (HIDDEN_DIM,), jnp.float32),
        "fc2_w": s * jax.random.normal(ks[6], (OUTPUT_DIM, HIDDEN_DIM), jnp.float32),
        "fc2_b": s * jax.random.normal(ks[7], (OUTPUT_DIM,), jnp.float32),
    }


if __name__ == "__main__":
    key = jax.random.PRNGKey(0)
    kx, kp = jax.random.split(key)
    # batch=2, channels=1, spatial=28 (28x28 is required by FLAT_DIM = C2*7*7)
    x = jax.random.normal(kx, (2, INPUT_CHANNELS, 28, 28), jnp.float32)
    params = init_params(kp)

    logits = jax.jit(cnn_forward)(x, params)
    logits = jax.block_until_ready(logits)
    assert logits.shape == (2, OUTPUT_DIM)

    ref = jax.block_until_ready(cnn_reference(x, params))
    assert jnp.allclose(logits, ref, atol=1e-4, rtol=1e-4), "mismatch vs reference"

    print("KERNEL_OK")
</pallas_src>

<mosaic_0001>
module attributes {stable_mosaic.version = 11 : i64} {
  func.func @conv_relu_pool_kernel(%arg0: i32, %arg1: memref<4x392x9xf32, #tpu.memory_space<vmem>>, %arg2: memref<9x128xf32, #tpu.memory_space<vmem>>, %arg3: memref<1x128xf32, #tpu.memory_space<vmem>>, %arg4: memref<392x128xf32, #tpu.memory_space<vmem>>) attributes {dimension_semantics = [#tpu.dimension_semantics<parallel>], iteration_bounds = array<i64: 1>, scalar_prefetch = 0 : i64, scratch_operands = 0 : i64, tpu.core_type = #tpu.core_type<tc>, window_params = [{transform_indices = @transform_0, window_bounds = array<i64: 4, 392, 9>}, {pipeline_mode = #tpu.pipeline_mode<synchronous>, transform_indices = @transform_1, window_bounds = array<i64: 9, 128>}, {pipeline_mode = #tpu.pipeline_mode<synchronous>, transform_indices = @transform_2, window_bounds = array<i64: 1, 128>}, {transform_indices = @transform_3, window_bounds = array<i64: 392, 128>}]} {
    %c0 = arith.constant 0 : index
    %c0_0 = arith.constant 0 : index
    %0 = vector.load %arg2[%c0, %c0_0] : memref<9x128xf32, #tpu.memory_space<vmem>>, vector<9x128xf32>
    %c0_1 = arith.constant 0 : index
    %c0_2 = arith.constant 0 : index
    %c0_3 = arith.constant 0 : index
    %1 = vector.load %arg1[%c0_1, %c0_2, %c0_3] : memref<4x392x9xf32, #tpu.memory_space<vmem>>, vector<4x392x9xf32>
    %2 = vector.shape_cast %1 : vector<4x392x9xf32> to vector<1568x9xf32>
    %cst = arith.constant dense<0.000000e+00> : vector<1568x128xf32>
    %3 = tpu.matmul %2, %0, %cst {dimension_numbers = #tpu.dot_dimension_numbers<[1], [0], [0], [1], [0, 0, 1, 1], [], []>} : vector<1568x9xf32>, vector<9x128xf32>, vector<1568x128xf32> -> vector<1568x128xf32>
    %4 = vector.shape_cast %3 : vector<1568x128xf32> to vector<4x392x128xf32>
    %cst_4 = arith.constant dense<0xFF800000> : vector<392x128xf32>
    %5 = vector.multi_reduction <maximumf>, %4, %cst_4 [0] : vector<4x392x128xf32> to vector<392x128xf32>
    %c0_5 = arith.constant 0 : index
    %c0_6 = arith.constant 0 : index
    %6 = vector.load %arg3[%c0_5, %c0_6] : memref<1x128xf32, #tpu.memory_space<vmem>>, vector<1x128xf32>
    %7 = vector.broadcast %6 : vector<1x128xf32> to vector<392x128xf32>
    %8 = arith.addf %5, %7 : vector<392x128xf32>
    %cst_7 = arith.constant 0.000000e+00 : f32
    %9 = vector.broadcast %cst_7 : f32 to vector<392x128xf32>
    %10 = arith.maximumf %8, %9 : vector<392x128xf32>
    %c0_8 = arith.constant 0 : index
    %c0_9 = arith.constant 0 : index
    %11 = vector.load %arg4[%c0_8, %c0_9] : memref<392x128xf32, #tpu.memory_space<vmem>>, vector<392x128xf32>
    tpu.vector_store %arg4[%c0_8, %c0_9], %10 {strides = array<i32>} : memref<392x128xf32, #tpu.memory_space<vmem>>, vector<392x128xf32>,
    return
  }
  func.func @transform_0(%arg0: i32) -> (i32, i32, i32) {
    %c0_i32 = arith.constant 0 : i32
    %c0_i32_0 = arith.constant 0 : i32
    %c0_i32_1 = arith.constant 0 : i32
    return %c0_i32, %arg0, %c0_i32_0 : i32, i32, i32
  }
  func.func @transform_1(%arg0: i32) -> (i32, i32) {
    %c0_i32 = arith.constant 0 : i32
    %c0_i32_0 = arith.constant 0 : i32
    %c0_i32_1 = arith.constant 0 : i32
    return %c0_i32, %c0_i32_0 : i32, i32
  }
  func.func @transform_2(%arg0: i32) -> (i32, i32) {
    %c0_i32 = arith.constant 0 : i32
    %c0_i32_0 = arith.constant 0 : i32
    %c0_i32_1 = arith.constant 0 : i32
    return %c0_i32, %c0_i32_0 : i32, i32
  }
  func.func @transform_3(%arg0: i32) -> (i32, i32) {
    %c0_i32 = arith.constant 0 : i32
    %c0_i32_0 = arith.constant 0 : i32
    return %arg0, %c0_i32 : i32, i32
  }
}

module attributes {stable_mosaic.version = 11 : i64} {
  func.func @conv_relu_pool_kernel(%arg0: i32, %arg1: memref<4x104x36xf32, #tpu.memory_space<vmem>>, %arg2: memref<36x128xf32, #tpu.memory_space<vmem>>, %arg3: memref<1x128xf32, #tpu.memory_space<vmem>>, %arg4: memref<104x128xf32, #tpu.memory_space<vmem>>) attributes {dimension_semantics = [#tpu.dimension_semantics<parallel>], iteration_bounds = array<i64: 1>, scalar_prefetch = 0 : i64, scratch_operands = 0 : i64, tpu.core_type = #tpu.core_type<tc>, window_params = [{transform_indices = @transform_0, window_bounds = array<i64: 4, 104, 36>}, {pipeline_mode = #tpu.pipeline_mode<synchronous>, transform_indices = @transform_1, window_bounds = array<i64: 36, 128>}, {pipeline_mode = #tpu.pipeline_mode<synchronous>, transform_indices = @transform_2, window_bounds = array<i64: 1, 128>}, {transform_indices = @transform_3, window_bounds = array<i64: 104, 128>}]} {
    %c0 = arith.constant 0 : index
    %c0_0 = arith.constant 0 : index
    %0 = vector.load %arg2[%c0, %c0_0] : memref<36x128xf32, #tpu.memory_space<vmem>>, vector<36x128xf32>
    %c0_1 = arith.constant 0 : index
    %c0_2 = arith.constant 0 : index
    %c0_3 = arith.constant 0 : index
    %1 = vector.load %arg1[%c0_1, %c0_2, %c0_3] : memref<4x104x36xf32, #tpu.memory_space<vmem>>, vector<4x104x36xf32>
    %2 = vector.shape_cast %1 : vector<4x104x36xf32> to vector<416x36xf32>
    %cst = arith.constant dense<0.000000e+00> : vector<416x128xf32>
    %3 = tpu.matmul %2, %0, %cst {dimension_numbers = #tpu.dot_dimension_numbers<[1], [0], [0], [1], [0, 0, 1, 1], [], []>} : vector<416x36xf32>, vector<36x128xf32>, vector<416x128xf32> -> vector<416x128xf32>
    %4 = vector.shape_cast %3 : vector<416x128xf32> to vector<4x104x128xf32>
    %cst_4 = arith.constant dense<0xFF800000> : vector<104x128xf32>
    %5 = vector.multi_reduction <maximumf>, %4, %cst_4 [0] : vector<4x104x128xf32> to vector<104x128xf32>
    %c0_5 = arith.constant 0 : index
    %c0_6 = arith.constant 0 : index
    %6 = vector.load %arg3[%c0_5, %c0_6] : memref<1x128xf32, #tpu.memory_space<vmem>>, vector<1x128xf32>
    %7 = vector.broadcast %6 : vector<1x128xf32> to vector<104x128xf32>
    %8 = arith.addf %5, %7 : vector<104x128xf32>
    %cst_7 = arith.constant 0.000000e+00 : f32
    %9 = vector.broadcast %cst_7 : f32 to vector<104x128xf32>
    %10 = arith.maximumf %8, %9 : vector<104x128xf32>
    %c0_8 = arith.constant 0 : index
    %c0_9 = arith.constant 0 : index
    %11 = vector.load %arg4[%c0_8, %c0_9] : memref<104x128xf32, #tpu.memory_space<vmem>>, vector<104x128xf32>
    tpu.vector_store %arg4[%c0_8, %c0_9], %10 {strides = array<i32>} : memref<104x128xf32, #tpu.memory_space<vmem>>, vector<104x128xf32>,
    return
  }
  func.func @transform_0(%arg0: i32) -> (i32, i32, i32) {
    %c0_i32 = arith.constant 0 : i32
    %c0_i32_0 = arith.constant 0 : i32
    %c0_i32_1 = arith.constant 0 : i32
    return %c0_i32, %arg0, %c0_i32_0 : i32, i32, i32
  }
  func.func @transform_1(%arg0: i32) -> (i32, i32) {
    %c0_i32 = arith.constant 0 : i32
    %c0_i32_0 = arith.constant 0 : i32
    %c0_i32_1 = arith.constant 0 : i32
    return %c0_i32, %c0_i32_0 : i32, i32
  }
  func.func @transform_2(%arg0: i32) -> (i32, i32) {
    %c0_i32 = arith.constant 0 : i32
    %c0_i32_0 = arith.constant 0 : i32
    %c0_i32_1 = arith.constant 0 : i32
    return %c0_i32, %c0_i32_0 : i32, i32
  }
  func.func @transform_3(%arg0: i32) -> (i32, i32) {
    %c0_i32 = arith.constant 0 : i32
    %c0_i32_0 = arith.constant 0 : i32
    return %arg0, %c0_i32 : i32, i32
  }
}

module attributes {stable_mosaic.version = 11 : i64} {
  func.func @mlp_kernel(%arg0: i32, %arg1: memref<2x392xf32, #tpu.memory_space<vmem>>, %arg2: memref<392x128xf32, #tpu.memory_space<vmem>>, %arg3: memref<1x128xf32, #tpu.memory_space<vmem>>, %arg4: memref<128x128xf32, #tpu.memory_space<vmem>>, %arg5: memref<1x128xf32, #tpu.memory_space<vmem>>, %arg6: memref<2x128xf32, #tpu.memory_space<vmem>>) attributes {dimension_semantics = [#tpu.dimension_semantics<parallel>], iteration_bounds = array<i64: 1>, scalar_prefetch = 0 : i64, scratch_operands = 0 : i64, tpu.core_type = #tpu.core_type<tc>, window_params = [{transform_indices = @transform_0, window_bounds = array<i64: 2, 392>}, {pipeline_mode = #tpu.pipeline_mode<synchronous>, transform_indices = @transform_1, window_bounds = array<i64: 392, 128>}, {pipeline_mode = #tpu.pipeline_mode<synchronous>, transform_indices = @transform_2, window_bounds = array<i64: 1, 128>}, {pipeline_mode = #tpu.pipeline_mode<synchronous>, transform_indices = @transform_3, window_bounds = array<i64: 128, 128>}, {pipeline_mode = #tpu.pipeline_mode<synchronous>, transform_indices = @transform_4, window_bounds = array<i64: 1, 128>}, {transform_indices = @transform_5, window_bounds = array<i64: 2, 128>}]} {
    %c0 = arith.constant 0 : index
    %c0_0 = arith.constant 0 : index
    %0 = vector.load %arg1[%c0, %c0_0] : memref<2x392xf32, #tpu.memory_space<vmem>>, vector<2x392xf32>
    %c0_1 = arith.constant 0 : index
    %c0_2 = arith.constant 0 : index
    %1 = vector.load %arg2[%c0_1, %c0_2] : memref<392x128xf32, #tpu.memory_space<vmem>>, vector<392x128xf32>
    %cst = arith.constant dense<0.000000e+00> : vector<2x128xf32>
    %2 = tpu.matmul %0, %1, %cst {dimension_numbers = #tpu.dot_dimension_numbers<[1], [0], [0], [1], [0, 0, 1, 1], [], []>} : vector<2x392xf32>, vector<392x128xf32>, vector<2x128xf32> -> vector<2x128xf32>
    %c0_3 = arith.constant 0 : index
    %c0_4 = arith.constant 0 : index
    %3 = vector.load %arg3[%c0_3, %c0_4] : memref<1x128xf32, #tpu.memory_space<vmem>>, vector<1x128xf32>
    %4 = vector.broadcast %3 : vector<1x128xf32> to vector<2x128xf32>
    %5 = arith.addf %2, %4 : vector<2x128xf32>
    %cst_5 = arith.constant 0.000000e+00 : f32
    %6 = vector.broadcast %cst_5 : f32 to vector<2x128xf32>
    %7 = arith.maximumf %5, %6 : vector<2x128xf32>
    %c0_6 = arith.constant 0 : index
    %c0_7 = arith.constant 0 : index
    %8 = vector.load %arg4[%c0_6, %c0_7] : memref<128x128xf32, #tpu.memory_space<vmem>>, vector<128x128xf32>
    %cst_8 = arith.constant dense<0.000000e+00> : vector<2x128xf32>
    %9 = tpu.matmul %7, %8, %cst_8 {dimension_numbers = #tpu.dot_dimension_numbers<[1], [0], [0], [1], [0, 0, 1, 1], [], []>} : vector<2x128xf32>, vector<128x128xf32>, vector<2x128xf32> -> vector<2x128xf32>
    %c0_9 = arith.constant 0 : index
    %c0_10 = arith.constant 0 : index
    %10 = vector.load %arg5[%c0_9, %c0_10] : memref<1x128xf32, #tpu.memory_space<vmem>>, vector<1x128xf32>
    %11 = vector.broadcast %10 : vector<1x128xf32> to vector<2x128xf32>
    %12 = arith.addf %9, %11 : vector<2x128xf32>
    %c0_11 = arith.constant 0 : index
    %c0_12 = arith.constant 0 : index
    %13 = vector.load %arg6[%c0_11, %c0_12] : memref<2x128xf32, #tpu.memory_space<vmem>>, vector<2x128xf32>
    tpu.vector_store %arg6[%c0_11, %c0_12], %12 {strides = array<i32>} : memref<2x128xf32, #tpu.memory_space<vmem>>, vector<2x128xf32>,
    return
  }
  func.func @transform_0(%arg0: i32) -> (i32, i32) {
    %c0_i32 = arith.constant 0 : i32
    %c0_i32_0 = arith.constant 0 : i32
    return %arg0, %c0_i32 : i32, i32
  }
  func.func @transform_1(%arg0: i32) -> (i32, i32) {
    %c0_i32 = arith.constant 0 : i32
    %c0_i32_0 = arith.constant 0 : i32
    %c0_i32_1 = arith.constant 0 : i32
    return %c0_i32, %c0_i32_0 : i32, i32
  }
  func.func @transform_2(%arg0: i32) -> (i32, i32) {
    %c0_i32 = arith.constant 0 : i32
    %c0_i32_0 = arith.constant 0 : i32
    %c0_i32_1 = arith.constant 0 : i32
    return %c0_i32, %c0_i32_0 : i32, i32
  }
  func.func @transform_3(%arg0: i32) -> (i32, i32) {
    %c0_i32 = arith.constant 0 : i32
    %c0_i32_0 = arith.constant 0 : i32
    %c0_i32_1 = arith.constant 0 : i32
    return %c0_i32, %c0_i32_0 : i32, i32
  }
  func.func @transform_4(%arg0: i32) -> (i32, i32) {
    %c0_i32 = arith.constant 0 : i32
    %c0_i32_0 = arith.constant 0 : i32
    %c0_i32_1 = arith.constant 0 : i32
    return %c0_i32, %c0_i32_0 : i32, i32
  }
  func.func @transform_5(%arg0: i32) -> (i32, i32) {
    %c0_i32 = arith.constant 0 : i32
    %c0_i32_0 = arith.constant 0 : i32
    return %arg0, %c0_i32 : i32, i32
  }
}

</mosaic_0001>

<llo_original>
// kernel: cnn_forward.3
$region0: #{cnn_forward.3}
  #allocation0 [shape = 'u32[]', space=smem, size = 0x4, offset = 0x4, fixed_abs, tag = 'smem constant byte address 0x4 - core index']
  #allocation1 [shape = 'u32[144,128]{1,0:T(1,128)}', space=vmem, size = 0x12000, scoped, tag = 'internal scratch']
  %s0 = inlined_call_operand.vmem [shape: f32[4,392,9], index: 0, kind: input, shape index: {}]
  %s1 = inlined_call_operand.vmem [shape: f32[9,128], index: 1, kind: input, shape index: {}]
  %s2 = inlined_call_operand.vmem [shape: f32[1,128], index: 2, kind: input, shape index: {}]
  %s3 = inlined_call_operand.vmem [shape: f32[392,128], index: 3, kind: output, shape index: {}]
  %s4 = sld [smem:[#allocation0]]
  $region22: #{cnn_forward.3} parent=0
    _
  %s6 = ssub.s32 1, %s4
  %s7 = scalar_select 0, %s6, %s4
  // Predicated region
  $region2: #{cnn_forward.3} parent=0 // pred_check
    _
  $region3: #{cnn_forward.3} parent=0 // pred_check_branch
    %9 = sbr.rel (0) target = $region5
  $region4: #{cnn_forward.3} parent=0 // pred_region
    _
  $region5: #{cnn_forward.3} parent=0 // pred_fallthru
    _
  // Predicated region
  $region6: #{cnn_forward.3} parent=0 // pred_check
    _
  $region7: #{cnn_forward.3} parent=0 // pred_check_branch
    %11 = sbr.rel (0) target = $region9
  $region8: #{cnn_forward.3} parent=0 // pred_region
    _
  $region9: #{cnn_forward.3} parent=0 // pred_fallthru
    _
  // Predicated region
  $region10: #{cnn_forward.3} parent=0 // pred_check
    _
  $region11: #{cnn_forward.3} parent=0 // pred_check_branch
    %13 = sbr.rel (0) target = $region13
  $region12: #{cnn_forward.3} parent=0 // pred_region
    _
  $region13: #{cnn_forward.3} parent=0 // pred_fallthru
    _
  %v14 = vld [vmem:[%s1] sm:$0xff]
  %v15 = vld [vmem:[%s1 + $0x8] sm:$0x1]
  %v16 = vld [vmem:[%s0] sm:$0xff]
  %v17 = vld [vmem:[%s0 + $0x8] sm:$0xff]
  %v18 = vld [vmem:[%s0 + $0x10] sm:$0xff]
  %v19 = vld [vmem:[%s0 + $0x18] sm:$0xff]
  %v20 = vld [vmem:[%s0 + $0x20] sm:$0xff]
  %v21 = vld [vmem:[%s0 + $0x28] sm:$0xff]
  %v22 = vld [vmem:[%s0 + $0x30] sm:$0xff]
  %v23 = vld [vmem:[%s0 + $0x38] sm:$0xff]
  %v24 = vld [vmem:[%s0 + $0x40] sm:$0xff]
  %v25 = vld [vmem:[%s0 + $0x48] sm:$0xff]
  %v26 = vld [vmem:[%s0 + $0x50] sm:$0xff]
  %v27 = vld [vmem:[%s0 + $0x58] sm:$0xff]
  %v28 = vld [vmem:[%s0 + $0x60] sm:$0xff]
  %v29 = vld [vmem:[%s0 + $0x68] sm:$0xff]
  %v30 = vld [vmem:[%s0 + $0x70] sm:$0xff]
  %v31 = vld [vmem:[%s0 + $0x78] sm:$0xff]
  %v32 = vld [vmem:[%s0 + $0x80] sm:$0xff]
  %v33 = vld [vmem:[%s0 + $0x88] sm:$0xff]
  %v34 = vld [vmem:[%s0 + $0x90] sm:$0xff]
  %v35 = vld [vmem:[%s0 + $0x98] sm:$0xff]
  %v36 = vld [vmem:[%s0 + $0xa0] sm:$0xff]
  %v37 = vld [vmem:[%s0 + $0xa8] sm:$0xff]
  %v38 = vld [vmem:[%s0 + $0xb0] sm:$0xff]
  %v39 = vld [vmem:[%s0 + $0xb8] sm:$0xff]
  %v40 = vld [vmem:[%s0 + $0xc0] sm:$0xff]
  %v41 = vld [vmem:[%s0 + $0xc8] sm:$0xff]
  %v42 = vld [vmem:[%s0 + $0xd0] sm:$0xff]
  %v43 = vld [vmem:[%s0 + $0xd8] sm:$0xff]
  %v44 = vld [vmem:[%s0 + $0xe0] sm:$0xff]
  %v45 = vld [vmem:[%s0 + $0xe8] sm:$0xff]
  %v46 = vld [vmem:[%s0 + $0xf0] sm:$0xff]
  %v47 = vld [vmem:[%s0 + $0xf8] sm:$0xff]
  %v48 = vld [vmem:[%s0 + $0x100] sm:$0xff]
  %v49 = vld [vmem:[%s0 + $0x108] sm:$0xff]
  %v50 = vld [vmem:[%s0 + $0x110] sm:$0xff]
  %v51 = vld [vmem:[%s0 + $0x118] sm:$0xff]
  %v52 = vld [vmem:[%s0 + $0x120] sm:$0xff]
  %v53 = vld [vmem:[%s0 + $0x128] sm:$0xff]
  %v54 = vld [vmem:[%s0 + $0x130] sm:$0xff]
  %v55 = vld [vmem:[%s0 + $0x138] sm:$0xff]
  %v56 = vld [vmem:[%s0 + $0x140] sm:$0xff]
  %v57 = vld [vmem:[%s0 + $0x148] sm:$0xff]
  %v58 = vld [vmem:[%s0 + $0x150] sm:$0xff]
  %v59 = vld [vmem:[%s0 + $0x158] sm:$0xff]
  %v60 = vld [vmem:[%s0 + $0x160] sm:$0xff]
  %v61 = vld [vmem:[%s0 + $0x168] sm:$0xff]
  %v62 = vld [vmem:[%s0 + $0x170] sm:$0xff]
  %v63 = vld [vmem:[%s0 + $0x178] sm:$0xff]
  %v64 = vld [vmem:[%s0 + $0x180] sm:$0xff]
  %v65 = vld [vmem:[%s0 + $0x188] sm:$0xff]
  %v66 = vld [vmem:[%s0 + $0x190] sm:$0xff]
  %v67 = vld [vmem:[%s0 + $0x198] sm:$0xff]
  %v68 = vld [vmem:[%s0 + $0x1a0] sm:$0xff]
  %v69 = vld [vmem:[%s0 + $0x1a8] sm:$0xff]
  %v70 = vld [vmem:[%s0 + $0x1b0] sm:$0xff]
  %v71 = vld [vmem:[%s0 + $0x1b8] sm:$0xff]
  %v72 = vld [vmem:[%s0 + $0x1c0] sm:$0xff]
  %v73 = vld [vmem:[%s0 + $0x1c8] sm:$0xff]
  %v74 = vld [vmem:[%s0 + $0x1d0] sm:$0xff]
  %v75 = vld [vmem:[%s0 + $0x1d8] sm:$0xff]
  %v76 = vld [vmem:[%s0 + $0x1e0] sm:$0xff]
  %v77 = vld [vmem:[%s0 + $0x1e8] sm:$0xff]
  %v78 = vld [vmem:[%s0 + $0x1f0] sm:$0xff]
  %v79 = vld [vmem:[%s0 + $0x1f8] sm:$0xff]
  %v80 = vld [vmem:[%s0 + $0x200] sm:$0xff]
  %v81 = vld [vmem:[%s0 + $0x208] sm:$0xff]
  %v82 = vld [vmem:[%s0 + $0x210] sm:$0xff]
  %v83 = vld [vmem:[%s0 + $0x218] sm:$0xff]
  %v84 = vld [vmem:[%s0 + $0x220] sm:$0xff]
  %v85 = vld [vmem:[%s0 + $0x228] sm:$0xff]
  %v86 = vld [vmem:[%s0 + $0x230] sm:$0xff]
  %v87 = vld [vmem:[%s0 + $0x238] sm:$0xff]
  %v88 = vld [vmem:[%s0 + $0x240] sm:$0xff]
  %v89 = vld [vmem:[%s0 + $0x248] sm:$0xff]
  %v90 = vld [vmem:[%s0 + $0x250] sm:$0xff]
  %v91 = vld [vmem:[%s0 + $0x258] sm:$0xff]
  %v92 = vld [vmem:[%s0 + $0x260] sm:$0xff]
  %v93 = vld [vmem:[%s0 + $0x268] sm:$0xff]
  %v94 = vld [vmem:[%s0 + $0x270] sm:$0xff]
  %v95 = vld [vmem:[%s0 + $0x278] sm:$0xff]
  %v96 = vld [vmem:[%s0 + $0x280] sm:$0xff]
  %v97 = vld [vmem:[%s0 + $0x288] sm:$0xff]
  %v98 = vld [vmem:[%s0 + $0x290] sm:$0xff]
  %v99 = vld [vmem:[%s0 + $0x298] sm:$0xff]
  %v100 = vld [vmem:[%s0 + $0x2a0] sm:$0xff]
  %v101 = vld [vmem:[%s0 + $0x2a8] sm:$0xff]
  %v102 = vld [vmem:[%s0 + $0x2b0] sm:$0xff]
  %v103 = vld [vmem:[%s0 + $0x2b8] sm:$0xff]
  %v104 = vld [vmem:[%s0 + $0x2c0] sm:$0xff]
  %v105 = vld [vmem:[%s0 + $0x2c8] sm:$0xff]
  %v106 = vld [vmem:[%s0 + $0x2d0] sm:$0xff]
  %v107 = vld [vmem:[%s0 + $0x2d8] sm:$0xff]
  %v108 = vld [vmem:[%s0 + $0x2e0] sm:$0xff]
  %v109 = vld [vmem:[%s0 + $0x2e8] sm:$0xff]
  %v110 = vld [vmem:[%s0 + $0x2f0] sm:$0xff]
  %v111 = vld [vmem:[%s0 + $0x2f8] sm:$0xff]
  %v112 = vld [vmem:[%s0 + $0x300] sm:$0xff]
  %v113 = vld [vmem:[%s0 + $0x308] sm:$0xff]
  %v114 = vld [vmem:[%s0 + $0x310] sm:$0xff]
  %v115 = vld [vmem:[%s0 + $0x318] sm:$0xff]
  %v116 = vld [vmem:[%s0 + $0x320] sm:$0xff]
  %v117 = vld [vmem:[%s0 + $0x328] sm:$0xff]
  %v118 = vld [vmem:[%s0 + $0x330] sm:$0xff]
  %v119 = vld [vmem:[%s0 + $0x338] sm:$0xff]
  %v120 = vld [vmem:[%s0 + $0x340] sm:$0xff]
  %v121 = vld [vmem:[%s0 + $0x348] sm:$0xff]
  %v122 = vld [vmem:[%s0 + $0x350] sm:$0xff]
  %v123 = vld [vmem:[%s0 + $0x358] sm:$0xff]
  %v124 = vld [vmem:[%s0 + $0x360] sm:$0xff]
  %v125 = vld [vmem:[%s0 + $0x368] sm:$0xff]
  %v126 = vld [vmem:[%s0 + $0x370] sm:$0xff]
  %v127 = vld [vmem:[%s0 + $0x378] sm:$0xff]
  %v128 = vld [vmem:[%s0 + $0x380] sm:$0xff]
  %v129 = vld [vmem:[%s0 + $0x388] sm:$0xff]
  %v130 = vld [vmem:[%s0 + $0x390] sm:$0xff]
  %v131 = vld [vmem:[%s0 + $0x398] sm:$0xff]
  %v132 = vld [vmem:[%s0 + $0x3a0] sm:$0xff]
  %v133 = vld [vmem:[%s0 + $0x3a8] sm:$0xff]
  %v134 = vld [vmem:[%s0 + $0x3b0] sm:$0xff]
  %v135 = vld [vmem:[%s0 + $0x3b8] sm:$0xff]
  %v136 = vld [vmem:[%s0 + $0x3c0] sm:$0xff]
  %v137 = vld [vmem:[%s0 + $0x3c8] sm:$0xff]
  %v138 = vld [vmem:[%s0 + $0x3d0] sm:$0xff]
  %v139 = vld [vmem:[%s0 + $0x3d8] sm:$0xff]
  %v140 = vld [vmem:[%s0 + $0x3e0] sm:$0xff]
  %v141 = vld [vmem:[%s0 + $0x3e8] sm:$0xff]
  %v142 = vld [vmem:[%s0 + $0x3f0] sm:$0xff]
  %v143 = vld [vmem:[%s0 + $0x3f8] sm:$0xff]
  %v144 = vld [vmem:[%s0 + $0x400] sm:$0xff]
  %v145 = vld [vmem:[%s0 + $0x408] sm:$0xff]
  %v146 = vld [vmem:[%s0 + $0x410] sm:$0xff]
  %v147 = vld [vmem:[%s0 + $0x418] sm:$0xff]
  %v148 = vld [vmem:[%s0 + $0x420] sm:$0xff]
  %v149 = vld [vmem:[%s0 + $0x428] sm:$0xff]
  %v150 = vld [vmem:[%s0 + $0x430] sm:$0xff]
  %v151 = vld [vmem:[%s0 + $0x438] sm:$0xff]
  %v152 = vld [vmem:[%s0 + $0x440] sm:$0xff]
  %v153 = vld [vmem:[%s0 + $0x448] sm:$0xff]
  %v154 = vld [vmem:[%s0 + $0x450] sm:$0xff]
  %v155 = vld [vmem:[%s0 + $0x458] sm:$0xff]
  %v156 = vld [vmem:[%s0 + $0x460] sm:$0xff]
  %v157 = vld [vmem:[%s0 + $0x468] sm:$0xff]
  %v158 = vld [vmem:[%s0 + $0x470] sm:$0xff]
  %v159 = vld [vmem:[%s0 + $0x478] sm:$0xff]
  %v160 = vld [vmem:[%s0 + $0x480] sm:$0xff]
  %v161 = vld [vmem:[%s0 + $0x488] sm:$0xff]
  %v162 = vld [vmem:[%s0 + $0x490] sm:$0xff]
  %v163 = vld [vmem:[%s0 + $0x498] sm:$0xff]
  %v164 = vld [vmem:[%s0 + $0x4a0] sm:$0xff]
  %v165 = vld [vmem:[%s0 + $0x4a8] sm:$0xff]
  %v166 = vld [vmem:[%s0 + $0x4b0] sm:$0xff]
  %v167 = vld [vmem:[%s0 + $0x4b8] sm:$0xff]
  %v168 = vld [vmem:[%s0 + $0x4c0] sm:$0xff]
  %v169 = vld [vmem:[%s0 + $0x4c8] sm:$0xff]
  %v170 = vld [vmem:[%s0 + $0x4d0] sm:$0xff]
  %v171 = vld [vmem:[%s0 + $0x4d8] sm:$0xff]
  %v172 = vld [vmem:[%s0 + $0x4e0] sm:$0xff]
  %v173 = vld [vmem:[%s0 + $0x4e8] sm:$0xff]
  %v174 = vld [vmem:[%s0 + $0x4f0] sm:$0xff]
  %v175 = vld [vmem:[%s0 + $0x4f8] sm:$0xff]
  %v176 = vld [vmem:[%s0 + $0x500] sm:$0xff]
  %v177 = vld [vmem:[%s0 + $0x508] sm:$0xff]
  %v178 = vld [vmem:[%s0 + $0x510] sm:$0xff]
  %v179 = vld [vmem:[%s0 + $0x518] sm:$0xff]
  %v180 = vld [vmem:[%s0 + $0x520] sm:$0xff]
  %v181 = vld [vmem:[%s0 + $0x528] sm:$0xff]
  %v182 = vld [vmem:[%s0 + $0x530] sm:$0xff]
  %v183 = vld [vmem:[%s0 + $0x538] sm:$0xff]
  %v184 = vld [vmem:[%s0 + $0x540] sm:$0xff]
  %v185 = vld [vmem:[%s0 + $0x548] sm:$0xff]
  %v186 = vld [vmem:[%s0 + $0x550] sm:$0xff]
  %v187 = vld [vmem:[%s0 + $0x558] sm:$0xff]
  %v188 = vld [vmem:[%s0 + $0x560] sm:$0xff]
  %v189 = vld [vmem:[%s0 + $0x568] sm:$0xff]
  %v190 = vld [vmem:[%s0 + $0x570] sm:$0xff]
  %v191 = vld [vmem:[%s0 + $0x578] sm:$0xff]
  %v192 = vld [vmem:[%s0 + $0x580] sm:$0xff]
  %v193 = vld [vmem:[%s0 + $0x588] sm:$0xff]
  %v194 = vld [vmem:[%s0 + $0x590] sm:$0xff]
  %v195 = vld [vmem:[%s0 + $0x598] sm:$0xff]
  %v196 = vld [vmem:[%s0 + $0x5a0] sm:$0xff]
  %v197 = vld [vmem:[%s0 + $0x5a8] sm:$0xff]
  %v198 = vld [vmem:[%s0 + $0x5b0] sm:$0xff]
  %v199 = vld [vmem:[%s0 + $0x5b8] sm:$0xff]
  %v200 = vld [vmem:[%s0 + $0x5c0] sm:$0xff]
  %v201 = vld [vmem:[%s0 + $0x5c8] sm:$0xff]
  %v202 = vld [vmem:[%s0 + $0x5d0] sm:$0xff]
  %v203 = vld [vmem:[%s0 + $0x5d8] sm:$0xff]
  %v204 = vld [vmem:[%s0 + $0x5e0] sm:$0xff]
  %v205 = vld [vmem:[%s0 + $0x5e8] sm:$0xff]
  %v206 = vld [vmem:[%s0 + $0x5f0] sm:$0xff]
  %v207 = vld [vmem:[%s0 + $0x5f8] sm:$0xff]
  %v208 = vld [vmem:[%s0 + $0x600] sm:$0xff]
  %v209 = vld [vmem:[%s0 + $0x608] sm:$0xff]
  %v210 = vld [vmem:[%s0 + $0x610] sm:$0xff]
  %v211 = vld [vmem:[%s0 + $0x618] sm:$0xff]
  %vm212 = vcmask 72704
  %v214 = vsel %vm212, %v16, 0
  %v217 = vsel %vm212, %v17, 0
  %v220 = vsel %vm212, %v18, 0
  %v223 = vsel %vm212, %v19, 0
  %v226 = vsel %vm212, %v20, 0
  %v229 = vsel %vm212, %v21, 0
  %v232 = vsel %vm212, %v22, 0
  %v235 = vsel %vm212, %v23, 0
  %v238 = vsel %vm212, %v24, 0
  %v241 = vsel %vm212, %v25, 0
  %v244 = vsel %vm212, %v26, 0
  %v247 = vsel %vm212, %v27, 0
  %v250 = vsel %vm212, %v28, 0
  %v253 = vsel %vm212, %v29, 0
  %v256 = vsel %vm212, %v30, 0
  %v259 = vsel %vm212, %v31, 0
  %v262 = vsel %vm212, %v32, 0
  %v265 = vsel %vm212, %v33, 0
  %v268 = vsel %vm212, %v34, 0
  %v271 = vsel %vm212, %v35, 0
  %v274 = vsel %vm212, %v36, 0
  %v277 = vsel %vm212, %v37, 0
  %v280 = vsel %vm212, %v38, 0
  %v283 = vsel %vm212, %v39, 0
  %v286 = vsel %vm212, %v40, 0
  %v289 = vsel %vm212, %v41, 0
  %v292 = vsel %vm212, %v42, 0
  %v295 = vsel %vm212, %v43, 0
  %v298 = vsel %vm212, %v44, 0
  %v301 = vsel %vm212, %v45, 0
  %v304 = vsel %vm212, %v46, 0
  %v307 = vsel %vm212, %v47, 0
  %v310 = vsel %vm212, %v48, 0
  %v313 = vsel %vm212, %v49, 0
  %v316 = vsel %vm212, %v50, 0
  %v319 = vsel %vm212, %v51, 0
  %v322 = vsel %vm212, %v52, 0
  %v325 = vsel %vm212, %v53, 0
  %v328 = vsel %vm212, %v54, 0
  %v331 = vsel %vm212, %v55, 0
  %v334 = vsel %vm212, %v56, 0
  %v337 = vsel %vm212, %v57, 0
  %v340 = vsel %vm212, %v58, 0
  %v343 = vsel %vm212, %v59, 0
  %v346 = vsel %vm212, %v60, 0
  %v349 = vsel %vm212, %v61, 0
  %v352 = vsel %vm212, %v62, 0
  %v355 = vsel %vm212, %v63, 0
  %v358 = vsel %vm212, %v64, 0
  %v361 = vsel %vm212, %v65, 0
  %v364 = vsel %vm212, %v66, 0
  %v367 = vsel %vm212, %v67, 0
  %v370 = vsel %vm212, %v68, 0
  %v373 = vsel %vm212, %v69, 0
  %v376 = vsel %vm212, %v70, 0
  %v379 = vsel %vm212, %v71, 0
  %v382 = vsel %vm212, %v72, 0
  %v385 = vsel %vm212, %v73, 0
  %v388 = vsel %vm212, %v74, 0
  %v391 = vsel %vm212, %v75, 0
  %v394 = vsel %vm212, %v76, 0
  %v397 = vsel %vm212, %v77, 0
  %v400 = vsel %vm212, %v78, 0
  %v403 = vsel %vm212, %v79, 0
  %v406 = vsel %vm212, %v80, 0
  %v409 = vsel %vm212, %v81, 0
  %v412 = vsel %vm212, %v82, 0
  %v415 = vsel %vm212, %v83, 0
  %v418 = vsel %vm212, %v84, 0
  %v421 = vsel %vm212, %v85, 0
  %v424 = vsel %vm212, %v86, 0
  %v427 = vsel %vm212, %v87, 0
  %v430 = vsel %vm212, %v88, 0
  %v433 = vsel %vm212, %v89, 0
  %v436 = vsel %vm212, %v90, 0
  %v439 = vsel %vm212, %v91, 0
  %v442 = vsel %vm212, %v92, 0
  %v445 = vsel %vm212, %v93, 0
  %v448 = vsel %vm212, %v94, 0
  %v451 = vsel %vm212, %v95, 0
  %v454 = vsel %vm212, %v96, 0
  %v457 = vsel %vm212, %v97, 0
  %v460 = vsel %vm212, %v98, 0
  %v463 = vsel %vm212, %v99, 0
  %v466 = vsel %vm212, %v100, 0
  %v469 = vsel %vm212, %v101, 0
  %v472 = vsel %vm212, %v102, 0
  %v475 = vsel %vm212, %v103, 0
  %v478 = vsel %vm212, %v104, 0
  %v481 = vsel %vm212, %v105, 0
  %v484 = vsel %vm212, %v106, 0
  %v487 = vsel %vm212, %v107, 0
  %v490 = vsel %vm212, %v108, 0
  %v493 = vsel %vm212, %v109, 0
  %v496 = vsel %vm212, %v110, 0
  %v499 = vsel %vm212, %v111, 0
  %v502 = vsel %vm212, %v112, 0
  %v505 = vsel %vm212, %v113, 0
  %v508 = vsel %vm212, %v114, 0
  %v511 = vsel %vm212, %v115, 0
  %v514 = vsel %vm212, %v116, 0
  %v517 = vsel %vm212, %v117, 0
  %v520 = vsel %vm212, %v118, 0
  %v523 = vsel %vm212, %v119, 0
  %v526 = vsel %vm212, %v120, 0
  %v529 = vsel %vm212, %v121, 0
  %v532 = vsel %vm212, %v122, 0
  %v535 = vsel %vm212, %v123, 0
  %v538 = vsel %vm212, %v124, 0
  %v541 = vsel %vm212, %v125, 0
  %v544 = vsel %vm212, %v126, 0
  %v547 = vsel %vm212, %v127, 0
  %v550 = vsel %vm212, %v128, 0
  %v553 = vsel %vm212, %v129, 0
  %v556 = vsel %vm212, %v130, 0
  %v559 = vsel %vm212, %v131, 0
  %v562 = vsel %vm212, %v132, 0
  %v565 = vsel %vm212, %v133, 0
  %v568 = vsel %vm212, %v134, 0
  %v571 = vsel %vm212, %v135, 0
  %v574 = vsel %vm212, %v136, 0
  %v577 = vsel %vm212, %v137, 0
  %v580 = vsel %vm212, %v138, 0
  %v583 = vsel %vm212, %v139, 0
  %v586 = vsel %vm212, %v140, 0
  %v589 = vsel %vm212, %v141, 0
  %v592 = vsel %vm212, %v142, 0
  %v595 = vsel %vm212, %v143, 0
  %v598 = vsel %vm212, %v144, 0
  %v601 = vsel %vm212, %v145, 0
  %v604 = vsel %vm212, %v146, 0
  %v607 = vsel %vm212, %v147, 0
  %v610 = vsel %vm212, %v148, 0
  %v613 = vsel %vm212, %v149, 0
  %v616 = vsel %vm212, %v150, 0
  %v619 = vsel %vm212, %v151, 0
  %v622 = vsel %vm212, %v152, 0
  %v625 = vsel %vm212, %v153, 0
  %v628 = vsel %vm212, %v154, 0
  %v631 = vsel %vm212, %v155, 0
  %v634 = vsel %vm212, %v156, 0
  %v637 = vsel %vm212, %v157, 0
  %v640 = vsel %vm212, %v158, 0
  %v643 = vsel %vm212, %v159, 0
  %v646 = vsel %vm212, %v160, 0
  %v649 = vsel %vm212, %v161, 0
  %v652 = vsel %vm212, %v162, 0
  %v655 = vsel %vm212, %v163, 0
  %v658 = vsel %vm212, %v164, 0
  %v661 = vsel %vm212, %v165, 0
  %v664 = vsel %vm212, %v166, 0
  %v667 = vsel %vm212, %v167, 0
  %v670 = vsel %vm212, %v168, 0
  %v673 = vsel %vm212, %v169, 0
  %v676 = vsel %vm212, %v170, 0
  %v679 = vsel %vm212, %v171, 0
  %v682 = vsel %vm212, %v172, 0
  %v685 = vsel %vm212, %v173, 0
  %v688 = vsel %vm212, %v174, 0
  %v691 = vsel %vm212, %v175, 0
  %v694 = vsel %vm212, %v176, 0
  %v697 = vsel %vm212, %v177, 0
  %v700 = vsel %vm212, %v178, 0
  %v703 = vsel %vm212, %v179, 0
  %v706 = vsel %vm212, %v180, 0
  %v709 = vsel %vm212, %v181, 0
  %v712 = vsel %vm212, %v182, 0
  %v715 = vsel %vm212, %v183, 0
  %v718 = vsel %vm212, %v184, 0
  %v721 = vsel %vm212, %v185, 0
  %v724 = vsel %vm212, %v186, 0
  %v727 = vsel %vm212, %v187, 0
  %v730 = vsel %vm212, %v188, 0
  %v733 = vsel %vm212, %v189, 0
  %v736 = vsel %vm212, %v190, 0
  %v739 = vsel %vm212, %v191, 0
  %v742 = vsel %vm212, %v192, 0
  %v745 = vsel %vm212, %v193, 0
  %v748 = vsel %vm212, %v194, 0
  %v751 = vsel %vm212, %v195, 0
  %v754 = vsel %vm212, %v196, 0
  %v757 = vsel %vm212, %v197, 0
  %v760 = vsel %vm212, %v198, 0
  %v763 = vsel %vm212, %v199, 0
  %v766 = vsel %vm212, %v200, 0
  %v769 = vsel %vm212, %v201, 0
  %v772 = vsel %vm212, %v202, 0
  %v775 = vsel %vm212, %v203, 0
  %v778 = vsel %vm212, %v204, 0
  %v781 = vsel %vm212, %v205, 0
  %v784 = vsel %vm212, %v206, 0
  %v787 = vsel %vm212, %v207, 0
  %v790 = vsel %vm212, %v208, 0
  %v793 = vsel %vm212, %v209, 0
  %v796 = vsel %vm212, %v210, 0
  %v799 = vsel %vm212, %v211, 0
  %vm801 = vcmask 1040384
  %v803 = vsel %vm801, %v15, 0
  %805 = vmatprep.subr.mxu0 0.0
  %806 = vmatpush1.msra.mxu0 %v14
  %807 = vmatprep.subr.mxu0 0.0
  %808 = vmatpush1.msra.mxu0 %v803
  %809 = vmatprep.subr.mxu0 0.0
  %810 = vmatpush1.msra.mxu0 0.0
  %811 = vmatprep.subr.mxu0 0.0
  %812 = vmatpush1.msra.mxu0 0.0
  %813 = vmatprep.subr.mxu0 0.0
  %814 = vmatpush1.msra.mxu0 0.0
  %815 = vmatprep.subr.mxu0 0.0
  %816 = vmatpush1.msra.mxu0 0.0
  %817 = vmatprep.subr.mxu0 0.0
  %818 = vmatpush1.msra.mxu0 0.0
  %819 = vmatprep.subr.mxu0 0.0
  %820 = vmatpush1.msra.mxu0 0.0
  %821 = vmatprep.subr.mxu0 0.0
  %822 = vmatpush1.msra.mxu0 0.0
  %823 = vmatprep.subr.mxu0 0.0
  %824 = vmatpush1.msra.mxu0 0.0
  %825 = vmatprep.subr.mxu0 0.0
  %826 = vmatpush1.msra.mxu0 0.0
  %827 = vmatprep.subr.mxu0 0.0
  %828 = vmatpush1.msra.mxu0 0.0
  %829 = vmatprep.subr.mxu0 0.0
  %830 = vmatpush1.msra.mxu0 0.0
  %831 = vmatprep.subr.mxu0 0.0
  %832 = vmatpush1.msra.mxu0 0.0
  %833 = vmatprep.subr.mxu0 0.0
  %834 = vmatpush1.msra.mxu0 0.0
  %835 = vmatprep.subr.mxu0 0.0
  %836 = vmatpush1.msra.mxu0 0.0
  %837 = vmatprep.subr.mxu0 0.0
  %838 = vmatpush1.msra.mxu0 0.0
  %839 = vmatprep.subr.mxu0 0.0
  %840 = vmatpush1.msra.mxu0 0.0
  %841 = vmatprep.subr.mxu0 0.0
  %842 = vmatpush1.msra.mxu0 0.0
  %843 = vmatprep.subr.mxu0 0.0
  %844 = vmatpush1.msra.mxu0 0.0
  %845 = vmatprep.subr.mxu0 0.0
  %846 = vmatpush1.msra.mxu0 0.0
  %847 = vmatprep.subr.mxu0 0.0
  %848 = vmatpush1.msra.mxu0 0.0
  %849 = vmatprep.subr.mxu0 0.0
  %850 = vmatpush1.msra.mxu0 0.0
  %851 = vmatprep.subr.mxu0 0.0
  %852 = vmatpush1.msra.mxu0 0.0
  %853 = vmatprep.subr.mxu0 0.0
  %854 = vmatpush1.msra.mxu0 0.0
  %855 = vmatprep.subr.mxu0 0.0
  %856 = vmatpush1.msra.mxu0 0.0
  %857 = vmatprep.subr.mxu0 0.0
  %858 = vmatpush1.msra.mxu0 0.0
  %859 = vmatprep.subr.mxu0 0.0
  %860 = vmatpush1.msra.mxu0 0.0
  %861 = vmatprep.subr.mxu0 0.0
  %862 = vmatpush1.msra.mxu0 0.0
  %863 = vmatprep.subr.mxu0 0.0
  %864 = vmatpush1.msra.mxu0 0.0
  %865 = vmatprep.subr.mxu0 0.0
  %866 = vmatpush1.msra.mxu0 0.0
  %867 = vmatprep.subr.mxu0 0.0
  %868 = vmatpush1.msra.mxu0 0.0
  %869 = vmatprep.mubr.f32.mxu0 0.0
  %870 = vmatmul.mubr.f32.gmra.mrb[0].mxu0 %v214
  %v871 = vpop.f32.mrb[0].mxu0
  %v872 = vadd.f32 0.0, %v871
  %v873 = vpop.f32.mrb[0].mxu0
  %874 = vmatprep.mubr.f32.mxu0 0.0
  %875 = vmatmul.mubr.f32.gmra.mrb[0].mxu0 %v217
  %v876 = vpop.f32.mrb[0].mxu0
  %v877 = vadd.f32 0.0, %v876
  %v878 = vpop.f32.mrb[0].mxu0
  %879 = vmatprep.mubr.f32.mxu0 0.0
  %880 = vmatmul.mubr.f32.gmra.mrb[0].mxu0 %v220
  %v881 = vpop.f32.mrb[0].mxu0
  %v882 = vadd.f32 0.0, %v881
  %v883 = vpop.f32.mrb[0].mxu0
  %884 = vmatprep.mubr.f32.mxu0 0.0
  %885 = vmatmul.mubr.f32.gmra.mrb[0].mxu0 %v223
  %v886 = vpop.f32.mrb[0].mxu0
  %v887 = vadd.f32 0.0, %v886
  %v888 = vpop.f32.mrb[0].mxu0
  %889 = vmatprep.mubr.f32.mxu0 0.0
  %890 = vmatmul.mubr.f32.gmra.mrb[0].mxu0 %v226
  %v891 = vpop.f32.mrb[0].mxu0
  %v892 = vadd.f32 0.0, %v891
  %v893 = vpop.f32.mrb[0].mxu0
  %894 = vmatprep.mubr.f32.mxu0 0.0
  %895 = vmatmul.mubr.f32.gmra.mrb[0].mxu0 %v229
  %v896 = vpop.f32.mrb[0].mxu0
  %v897 = vadd.f32 0.0, %v896
  %v898 = vpop.f32.mrb[0].mxu0
  %899 = vmatprep.mubr.f32.mxu0 0.0
  %900 = vmatmul.mubr.f32.gmra.mrb[0].mxu0 %v232
  %v901 = vpop.f32.mrb[0].mxu0
  %v902 = vadd.f32 0.0, %v901
  %v903 = vpop.f32.mrb[0].mxu0
  %904 = vmatprep.mubr.f32.mxu0 0.0
  %905 = vmatmul.mubr.f32.gmra.mrb[0].mxu0 %v235
  %v906 = vpop.f32.mrb[0].mxu0
  %v907 = vadd.f32 0.0, %v906
  %v908 = vpop.f32.mrb[0].mxu0
  %909 = vmatprep.mubr.f32.mxu0 0.0
  %910 = vmatmul.mubr.f32.gmra.mrb[0].mxu0 %v238
  %v911 = vpop.f32.mrb[0].mxu0
  %v912 = vadd.f32 0.0, %v911
  %v913 = vpop.f32.mrb[0].mxu0
  %914 = vmatprep.mubr.f32.mxu0 0.0
  %915 = vmatmul.mubr.f32.gmra.mrb[0].mxu0 %v241
  %v916 = vpop.f32.mrb[0].mxu0
  %v917 = vadd.f32 0.0, %v916
  %v918 = vpop.f32.mrb[0].mxu0
  %919 = vmatprep.mubr.f32.mxu0 0.0
  %920 = vmatmul.mubr.f32.gmra.mrb[0].mxu0 %v244
  %v921 = vpop.f32.mrb[0].mxu0
  %v922 = vadd.f32 0.0, %v921
  %v923 = vpop.f32.mrb[0].mxu0
  %924 = vmatprep.mubr.f32.mxu0 0.0
  %925 = vmatmul.mubr.f32.gmra.mrb[0].mxu0 %v247
  %v926 = vpop.f32.mrb[0].mxu0
  %v927 = vadd.f32 0.0, %v926
  %v928 = vpop.f32.mrb[0].mxu0
  %929 = vmatprep.mubr.f32.mxu0 0.0
  %930 = vmatmul.mubr.f32.gmra.mrb[0].mxu0 %v250
  %v931 = vpop.f32.mrb[0].mxu0
  %v932 = vadd.f32 0.0, %v931
  %v933 = vpop.f32.mrb[0].mxu0
  %934 = vmatprep.mubr.f32.mxu0 0.0
  %935 = vmatmul.mubr.f32.gmra.mrb[0].mxu0 %v253
  %v936 = vpop.f32.mrb[0].mxu0
  %v937 = vadd.f32 0.0, %v936
  %v938 = vpop.f32.mrb[0].mxu0
  %939 = vmatprep.mubr.f32.mxu0 0.0
  %940 = vmatmul.mubr.f32.gmra.mrb[0].mxu0 %v256
  %v941 = vpop.f32.mrb[0].mxu0
  %v942 = vadd.f32 0.0, %v941
  %v943 = vpop.f32.mrb[0].mxu0
  %944 = vmatprep.mubr.f32.mxu0 0.0
  %945 = vmatmul.mubr.f32.gmra.mrb[0].mxu0 %v259
  %v946 = vpop.f32.mrb[0].mxu0
  %v947 = vadd.f32 0.0, %v946
  %v948 = vpop.f32.mrb[0].mxu0
  %949 = vmatprep.mubr.f32.mxu0 0.0
  %950 = vmatmul.mubr.f32.gmra.mrb[0].mxu0 %v262
  %v951 = vpop.f32.mrb[0].mxu0
  %v952 = vadd.f32 0.0, %v951
  %v953 = vpop.f32.mrb[0].mxu0
  %954 = vmatprep.mubr.f32.mxu0 0.0
  %955 = vmatmul.mubr.f32.gmra.mrb[0].mxu0 %v265
  %v956 = vpop.f32.mrb[0].mxu0
  %v957 = vadd.f32 0.0, %v956
  %v958 = vpop.f32.mrb[0].mxu0
  %959 = vmatprep.mubr.f32.mxu0 0.0
  %960 = vmatmul.mubr.f32.gmra.mrb[0].mxu0 %v268
  %v961 = vpop.f32.mrb[0].mxu0
  %v962 = vadd.f32 0.0, %v961
  %v963 = vpop.f32.mrb[0].mxu0
  %964 = vmatprep.mubr.f32.mxu0 0.0
  %965 = vmatmul.mubr.f32.gmra.mrb[0].mxu0 %v271
  %v966 = vpop.f32.mrb[0].mxu0
  %v967 = vadd.f32 0.0, %v966
  %v968 = vpop.f32.mrb[0].mxu0
  %969 = vmatprep.mubr.f32.mxu0 0.0
  %970 = vmatmul.mubr.f32.gmra.mrb[0].mxu0 %v274
  %v971 = vpop.f32.mrb[0].mxu0
  %v972 = vadd.f32 0.0, %v971
  %v973 = vpop.f32.mrb[0].mxu0
  %974 = vmatprep.mubr.f32.mxu0 0.0
  %975 = vmatmul.mubr.f32.gmra.mrb[0].mxu0 %v277
  %v976 = vpop.f32.mrb[0].mxu0
  %v977 = vadd.f32 0.0, %v976
  %v978 = vpop.f32.mrb[0].mxu0
  %979 = vmatprep.mubr.f32.mxu0 0.0
  %980 = vmatmul.mubr.f32.gmra.mrb[0].mxu0 %v280
  %v981 = vpop.f32.mrb[0].mxu0
  %v982 = vadd.f32 0.0, %v981
  %v983 = vpop.f32.mrb[0].mxu0
  %984 = vmatprep.mubr.f32.mxu0 0.0
  %985 = vmatmul.mubr.f32.gmra.mrb[0].mxu0 %v283
  %v986 = vpop.f32.mrb[0].mxu0
  %v987 = vadd.f32 0.0, %v986
  %v988 = vpop.f32.mrb[0].mxu0
  %989 = vmatprep.mubr.f32.mxu0 0.0
  %990 = vmatmul.mubr.f32.gmra.mrb[0].mxu0 %v286
  %v991 = vpop.f32.mrb[0].mxu0
  %v992 = vadd.f32 0.0, %v991
  %v993 = vpop.f32.mrb[0].mxu0
  %994 = vmatprep.mubr.f32.mxu0 0.0
  %995 = vmatmul.mubr.f32.gmra.mrb[0].mxu0 %v289
  %v996 = vpop.f32.mrb[0].mxu0
  %v997 = vadd.f32 0.0, %v996
  %v998 = vpop.f32.mrb[0].mxu0
  %999 = vmatprep.mubr.f32.mxu0 0.0
  %1000 = vmatmul.mubr.f32.gmra.mrb[0].mxu0 %v292
  %v1001 = vpop.f32.mrb[0].mxu0
  %v1002 = vadd.f32 0.0, %v1001
  %v1003 = vpop.f32.mrb[0].mxu0
  %1004 = vmatprep.mubr.f32.mxu0 0.0
  %1005 = vmatmul.mubr.f32.gmra.mrb[0].mxu0 %v295
  %v1006 = vpop.f32.mrb[0].mxu0
  %v1007 = vadd.f32 0.0, %v1006
  %v1008 = vpop.f32.mrb[0].mxu0
  %1009 = vmatprep.mubr.f32.mxu0 0.0
  %1010 = vmatmul.mubr.f32.gmra.mrb[0].mxu0 %v298
  %v1011 = vpop.f32.mrb[0].mxu0
  %v1012 = vadd.f32 0.0, %v1011
  %v1013 = vpop.f32.mrb[0].mxu0
  %1014 = vmatprep.mubr.f32.mxu0 0.0
  %1015 = vmatmul.mubr.f32.gmra.mrb[0].mxu0 %v301
  %v1016 = vpop.f32.mrb[0].mxu0
  %v1017 = vadd.f32 0.0, %v1016
  %v1018 = vpop.f32.mrb[0].mxu0
  %1019 = vmatprep.mubr.f32.mxu0 0.0
  %1020 = vmatmul.mubr.f32.gmra.mrb[0].mxu0 %v304
  %v1021 = vpop.f32.mrb[0].mxu0
  %v1022 = vadd.f32 0.0, %v1021
  %v1023 = vpop.f32.mrb[0].mxu0
  %1024 = vmatprep.mubr.f32.mxu0 0.0
  %1025 = vmatmul.mubr.f32.gmra.mrb[0].mxu0 %v307
  %v1026 = vpop.f32.mrb[0].mxu0
  %v1027 = vadd.f32 0.0, %v1026
  %v1028 = vpop.f32.mrb[0].mxu0
  %1029 = vmatprep.mubr.f32.mxu0 0.0
  %1030 = vmatmul.mubr.f32.gmra.mrb[0].mxu0 %v310
  %v1031 = vpop.f32.mrb[0].mxu0
  %v1032 = vadd.f32 0.0, %v1031
  %v1033 = vpop.f32.mrb[0].mxu0
  %1034 = vmatprep.mubr.f32.mxu0 0.0
  %1035 = vmatmul.mubr.f32.gmra.mrb[0].mxu0 %v313
  %v1036 = vpop.f32.mrb[0].mxu0
  %v1037 = vadd.f32 0.0, %v1036
  %v1038 = vpop.f32.mrb[0].mxu0
  %1039 = vmatprep.mubr.f32.mxu0 0.0
  %1040 = vmatmul.mubr.f32.gmra.mrb[0].mxu0 %v316
  %v1041 = vpop.f32.mrb[0].mxu0
  %v1042 = vadd.f32 0.0, %v1041
  %v1043 = vpop.f32.mrb[0].mxu0
  %1044 = vmatprep.mubr.f32.mxu0 0.0
  %1045 = vmatmul.mubr.f32.gmra.mrb[0].mxu0 %v319
  %v1046 = vpop.f32.mrb[0].mxu0
  %v1047 = vadd.f32 0.0, %v1046
  %v1048 = vpop.f32.mrb[0].mxu0
  %1049 = vmatprep.mubr.f32.mxu0 0.0
  %1050 = vmatmul.mubr.f32.gmra.mrb[0].mxu0 %v322
  %v1051 = vpop.f32.mrb[0].mxu0
  %v1052 = vadd.f32 0.0, %v1051
  %v1053 = vpop.f32.mrb[0].mxu0
  %1054 = vmatprep.mubr.f32.mxu0 0.0
  %1055 = vmatmul.mubr.f32.gmra.mrb[0].mxu0 %v325
  %v1056 = vpop.f32.mrb[0].mxu0
  %v1057 = vadd.f32 0.0, %v1056
  %v1058 = vpop.f32.mrb[0].mxu0
  %1059 = vmatprep.mubr.f32.mxu0 0.0
  %1060 = vmatmul.mubr.f32.gmra.mrb[0].mxu0 %v328
  %v1061 = vpop.f32.mrb[0].mxu0
  %v1062 = vadd.f32 0.0, %v1061
  %v1063 = vpop.f32.mrb[0].mxu0
  %1064 = vmatprep.mubr.f32.mxu0 0.0
  %1065 = vmatmul.mubr.f32.gmra.mrb[0].mxu0 %v331
  %v1066 = vpop.f32.mrb[0].mxu0
  %v1067 = vadd.f32 0.0, %v1066
  %v1068 = vpop.f32.mrb[0].mxu0
  %1069 = vmatprep.mubr.f32.mxu0 0.0
  %1070 = vmatmul.mubr.f32.gmra.mrb[0].mxu0 %v334
  %v1071 = vpop.f32.mrb[0].mxu0
  %v1072 = vadd.f32 0.0, %v1071
  %v1073 = vpop.f32.mrb[0].mxu0
  %1074 = vmatprep.mubr.f32.mxu0 0.0
  %1075 = vmatmul.mubr.f32.gmra.mrb[0].mxu0 %v337
  %v1076 = vpop.f32.mrb[0].mxu0
  %v1077 = vadd.f32 0.0, %v1076
  %v1078 = vpop.f32.mrb[0].mxu0
  %1079 = vmatprep.mubr.f32.mxu0 0.0
  %1080 = vmatmul.mubr.f32.gmra.mrb[0].mxu0 %v340
  %v1081 = vpop.f32.mrb[0].mxu0
  %v1082 = vadd.f32 0.0, %v1081
  %v1083 = vpop.f32.mrb[0].mxu0
  %1084 = vmatprep.mubr.f32.mxu0 0.0
  %1085 = vmatmul.mubr.f32.gmra.mrb[0].mxu0 %v343
  %v1086 = vpop.f32.mrb[0].mxu0
  %v1087 = vadd.f32 0.0, %v1086
  %v1088 = vpop.f32.mrb[0].mxu0
  %1089 = vmatprep.mubr.f32.mxu0 0.0
  %1090 = vmatmul.mubr.f32.gmra.mrb[0].mxu0 %v346
  %v1091 = vpop.f32.mrb[0].mxu0
  %v1092 = vadd.f32 0.0, %v1091
  %v1093 = vpop.f32.mrb[0].mxu0
  %1094 = vmatprep.mubr.f32.mxu0 0.0
  %1095 = vmatmul.mubr.f32.gmra.mrb[0].mxu0 %v349
  %v1096 = vpop.f32.mrb[0].mxu0
  %v1097 = vadd.f32 0.0, %v1096
  %v1098 = vpop.f32.mrb[0].mxu0
  %1099 = vmatprep.mubr.f32.mxu0 0.0
  %1100 = vmatmul.mubr.f32.gmra.mrb[0].mxu0 %v352
  %v1101 = vpop.f32.mrb[0].mxu0
  %v1102 = vadd.f32 0.0, %v1101
  %v1103 = vpop.f32.mrb[0].mxu0
  %1104 = vmatprep.mubr.f32.mxu0 0.0
  %1105 = vmatmul.mubr.f32.gmra.mrb[0].mxu0 %v355
  %v1106 = vpop.f32.mrb[0].mxu0
  %v1107 = vadd.f32 0.0, %v1106
  %v1108 = vpop.f32.mrb[0].mxu0
  %1109 = vmatprep.mubr.f32.mxu0 0.0
  %1110 = vmatmul.mubr.f32.gmra.mrb[0].mxu0 %v358
  %v1111 = vpop.f32.mrb[0].mxu0
  %v1112 = vadd.f32 0.0, %v1111
  %v1113 = vpop.f32.mrb[0].mxu0
  %1114 = vmatprep.mubr.f32.mxu0 0.0
  %1115 = vmatmul.mubr.f32.gmra.mrb[0].mxu0 %v361
  %v1116 = vpop.f32.mrb[0].mxu0
  %v1117 = vadd.f32 0.0, %v1116
  %v1118 = vpop.f32.mrb[0].mxu0
  %1119 = vmatprep.mubr.f32.mxu0 0.0
  %1120 = vmatmul.mubr.f32.gmra.mrb[0].mxu0 %v364
  %v1121 = vpop.f32.mrb[0].mxu0
  %v1122 = vadd.f32 0.0, %v1121
  %v1123 = vpop.f32.mrb[0].mxu0
  %1124 = vmatprep.mubr.f32.mxu0 0.0
  %1125 = vmatmul.mubr.f32.gmra.mrb[0].mxu0 %v367
  %v1126 = vpop.f32.mrb[0].mxu0
  %v1127 = vadd.f32 0.0, %v1126
  %v1128 = vpop.f32.mrb[0].mxu0
  %1129 = vmatprep.mubr.f32.mxu0 0.0
  %1130 = vmatmul.mubr.f32.gmra.mrb[0].mxu0 %v370
  %v1131 = vpop.f32.mrb[0].mxu0
  %v1132 = vadd.f32 0.0, %v1131
  %v1133 = vpop.f32.mrb[0].mxu0
  %1134 = vmatprep.mubr.f32.mxu0 0.0
  %1135 = vmatmul.mubr.f32.gmra.mrb[0].mxu0 %v373
  %v1136 = vpop.f32.mrb[0].mxu0
  %v1137 = vadd.f32 0.0, %v1136
  %v1138 = vpop.f32.mrb[0].mxu0
  %1139 = vmatprep.mubr.f32.mxu0 0.0
  %1140 = vmatmul.mubr.f32.gmra.mrb[0].mxu0 %v376
  %v1141 = vpop.f32.mrb[0].mxu0
  %v1142 = vadd.f32 0.0, %v1141
  %v1143 = vpop.f32.mrb[0].mxu0
  %1144 = vmatprep.mubr.f32.mxu0 0.0
  %1145 = vmatmul.mubr.f32.gmra.mrb[0].mxu0 %v379
  %v1146 = vpop.f32.mrb[0].mxu0
  %v1147 = vadd.f32 0.0, %v1146
  %v1148 = vpop.f32.mrb[0].mxu0
  %1149 = vmatprep.mubr.f32.mxu0 0.0
  %1150 = vmatmul.mubr.f32.gmra.mrb[0].mxu0 %v382
  %v1151 = vpop.f32.mrb[0].mxu0
  %v1152 = vadd.f32 0.0, %v1151
  %v1153 = vpop.f32.mrb[0].mxu0
  %1154 = vmatprep.mubr.f32.mxu0 0.0
  %1155 = vmatmul.mubr.f32.gmra.mrb[0].mxu0 %v385
  %v1156 = vpop.f32.mrb[0].mxu0
  %v1157 = vadd.f32 0.0, %v1156
  %v1158 = vpop.f32.mrb[0].mxu0
  %1159 = vmatprep.mubr.f32.mxu0 0.0
  %1160 = vmatmul.mubr.f32.gmra.mrb[0].mxu0 %v388
  %v1161 = vpop.f32.mrb[0].mxu0
  %v1162 = vadd.f32 0.0, %v1161
  %v1163 = vpop.f32.mrb[0].mxu0
  %1164 = vmatprep.mubr.f32.mxu0 0.0
  %1165 = vmatmul.mubr.f32.gmra.mrb[0].mxu0 %v391
  %v1166 = vpop.f32.mrb[0].mxu0
  %v1167 = vadd.f32 0.0, %v1166
  %v1168 = vpop.f32.mrb[0].mxu0
  %1169 = vmatprep.mubr.f32.mxu0 0.0
  %1170 = vmatmul.mubr.f32.gmra.mrb[0].mxu0 %v394
  %v1171 = vpop.f32.mrb[0].mxu0
  %v1172 = vadd.f32 0.0, %v1171
  %v1173 = vpop.f32.mrb[0].mxu0
  %1174 = vmatprep.mubr.f32.mxu0 0.0
  %1175 = vmatmul.mubr.f32.gmra.mrb[0].mxu0 %v397
  %v1176 = vpop.f32.mrb[0].mxu0
  %v1177 = vadd.f32 0.0, %v1176
  %v1178 = vpop.f32.mrb[0].mxu0
  %1179 = vmatprep.mubr.f32.mxu0 0.0
  %1180 = vmatmul.mubr.f32.gmra.mrb[0].mxu0 %v400
  %v1181 = vpop.f32.mrb[0].mxu0
  %v1182 = vadd.f32 0.0, %v1181
  %v1183 = vpop.f32.mrb[0].mxu0
  %1184 = vmatprep.mubr.f32.mxu0 0.0
  %1185 = vmatmul.mubr.f32.gmra.mrb[0].mxu0 %v403
  %v1186 = vpop.f32.mrb[0].mxu0
  %v1187 = vadd.f32 0.0, %v1186
  %v1188 = vpop.f32.mrb[0].mxu0
  %1189 = vmatprep.mubr.f32.mxu0 0.0
  %1190 = vmatmul.mubr.f32.gmra.mrb[0].mxu0 %v406
  %v1191 = vpop.f32.mrb[0].mxu0
  %v1192 = vadd.f32 0.0, %v1191
  %v1193 = vpop.f32.mrb[0].mxu0
  %1194 = vmatprep.mubr.f32.mxu0 0.0
  %1195 = vmatmul.mubr.f32.gmra.mrb[0].mxu0 %v409
  %v1196 = vpop.f32.mrb[0].mxu0
  %v1197 = vadd.f32 0.0, %v1196
  %v1198 = vpop.f32.mrb[0].mxu0
  %1199 = vmatprep.mubr.f32.mxu0 0.0
  %1200 = vmatmul.mubr.f32.gmra.mrb[0].mxu0 %v412
  %v1201 = vpop.f32.mrb[0].mxu0
  %v1202 = vadd.f32 0.0, %v1201
  %v1203 = vpop.f32.mrb[0].mxu0
  %1204 = vmatprep.mubr.f32.mxu0 0.0
  %1205 = vmatmul.mubr.f32.gmra.mrb[0].mxu0 %v415
  %v1206 = vpop.f32.mrb[0].mxu0
  %v1207 = vadd.f32 0.0, %v1206
  %v1208 = vpop.f32.mrb[0].mxu0
  %1209 = vmatprep.mubr.f32.mxu0 0.0
  %1210 = vmatmul.mubr.f32.gmra.mrb[0].mxu0 %v418
  %v1211 = vpop.f32.mrb[0].mxu0
  %v1212 = vadd.f32 0.0, %v1211
  %v1213 = vpop.f32.mrb[0].mxu0
  %1214 = vmatprep.mubr.f32.mxu0 0.0
  %1215 = vmatmul.mubr.f32.gmra.mrb[0].mxu0 %v421
  %v1216 = vpop.f32.mrb[0].mxu0
  %v1217 = vadd.f32 0.0, %v1216
  %v1218 = vpop.f32.mrb[0].mxu0
  %1219 = vmatprep.mubr.f32.mxu0 0.0
  %1220 = vmatmul.mubr.f32.gmra.mrb[0].mxu0 %v424
  %v1221 = vpop.f32.mrb[0].mxu0
  %v1222 = vadd.f32 0.0, %v1221
  %v1223 = vpop.f32.mrb[0].mxu0
  %1224 = vmatprep.mubr.f32.mxu0 0.0
  %1225 = vmatmul.mubr.f32.gmra.mrb[0].mxu0 %v427
  %v1226 = vpop.f32.mrb[0].mxu0
  %v1227 = vadd.f32 0.0, %v1226
  %v1228 = vpop.f32.mrb[0].mxu0
  %1229 = vmatprep.mubr.f32.mxu0 0.0
  %1230 = vmatmul.mubr.f32.gmra.mrb[0].mxu0 %v430
  %v1231 = vpop.f32.mrb[0].mxu0
  %v1232 = vadd.f32 0.0, %v1231
  %v1233 = vpop.f32.mrb[0].mxu0
  %1234 = vmatprep.mubr.f32.mxu0 0.0
  %1235 = vmatmul.mubr.f32.gmra.mrb[0].mxu0 %v433
  %v1236 = vpop.f32.mrb[0].mxu0
  %v1237 = vadd.f32 0.0, %v1236
  %v1238 = vpop.f32.mrb[0].mxu0
  %1239 = vmatprep.mubr.f32.mxu0 0.0
  %1240 = vmatmul.mubr.f32.gmra.mrb[0].mxu0 %v436
  %v1241 = vpop.f32.mrb[0].mxu0
  %v1242 = vadd.f32 0.0, %v1241
  %v1243 = vpop.f32.mrb[0].mxu0
  %1244 = vmatprep.mubr.f32.mxu0 0.0
  %1245 = vmatmul.mubr.f32.gmra.mrb[0].mxu0 %v439
  %v1246 = vpop.f32.mrb[0].mxu0
  %v1247 = vadd.f32 0.0, %v1246
  %v1248 = vpop.f32.mrb[0].mxu0
  %1249 = vmatprep.mubr.f32.mxu0 0.0
  %1250 = vmatmul.mubr.f32.gmra.mrb[0].mxu0 %v442
  %v1251 = vpop.f32.mrb[0].mxu0
  %v1252 = vadd.f32 0.0, %v1251
  %v1253 = vpop.f32.mrb[0].mxu0
  %1254 = vmatprep.mubr.f32.mxu0 0.0
  %1255 = vmatmul.mubr.f32.gmra.mrb[0].mxu0 %v445
  %v1256 = vpop.f32.mrb[0].mxu0
  %v1257 = vadd.f32 0.0, %v1256
  %v1258 = vpop.f32.mrb[0].mxu0
  %1259 = vmatprep.mubr.f32.mxu0 0.0
  %1260 = vmatmul.mubr.f32.gmra.mrb[0].mxu0 %v448
  %v1261 = vpop.f32.mrb[0].mxu0
  %v1262 = vadd.f32 0.0, %v1261
  %v1263 = vpop.f32.mrb[0].mxu0
  %1264 = vmatprep.mubr.f32.mxu0 0.0
  %1265 = vmatmul.mubr.f32.gmra.mrb[0].mxu0 %v451
  %v1266 = vpop.f32.mrb[0].mxu0
  %v1267 = vadd.f32 0.0, %v1266
  %v1268 = vpop.f32.mrb[0].mxu0
  %1269 = vmatprep.mubr.f32.mxu0 0.0
  %1270 = vmatmul.mubr.f32.gmra.mrb[0].mxu0 %v454
  %v1271 = vpop.f32.mrb[0].mxu0
  %v1272 = vadd.f32 0.0, %v1271
  %v1273 = vpop.f32.mrb[0].mxu0
  %1274 = vmatprep.mubr.f32.mxu0 0.0
  %1275 = vmatmul.mubr.f32.gmra.mrb[0].mxu0 %v457
  %v1276 = vpop.f32.mrb[0].mxu0
  %v1277 = vadd.f32 0.0, %v1276
  %v1278 = vpop.f32.mrb[0].mxu0
  %1279 = vmatprep.mubr.f32.mxu0 0.0
  %1280 = vmatmul.mubr.f32.gmra.mrb[0].mxu0 %v460
  %v1281 = vpop.f32.mrb[0].mxu0
  %v1282 = vadd.f32 0.0, %v1281
  %v1283 = vpop.f32.mrb[0].mxu0
  %1284 = vmatprep.mubr.f32.mxu0 0.0
  %1285 = vmatmul.mubr.f32.gmra.mrb[0].mxu0 %v463
  %v1286 = vpop.f32.mrb[0].mxu0
  %v1287 = vadd.f32 0.0, %v1286
  %v1288 = vpop.f32.mrb[0].mxu0
  %1289 = vmatprep.mubr.f32.mxu0 0.0
  %1290 = vmatmul.mubr.f32.gmra.mrb[0].mxu0 %v466
  %v1291 = vpop.f32.mrb[0].mxu0
  %v1292 = vadd.f32 0.0, %v1291
  %v1293 = vpop.f32.mrb[0].mxu0
  %1294 = vmatprep.mubr.f32.mxu0 0.0
  %1295 = vmatmul.mubr.f32.gmra.mrb[0].mxu0 %v469
  %v1296 = vpop.f32.mrb[0].mxu0
  %v1297 = vadd.f32 0.0, %v1296
  %v1298 = vpop.f32.mrb[0].mxu0
  %1299 = vmatprep.mubr.f32.mxu0 0.0
  %1300 = vmatmul.mubr.f32.gmra.mrb[0].mxu0 %v472
  %v1301 = vpop.f32.mrb[0].mxu0
  %v1302 = vadd.f32 0.0, %v1301
  %v1303 = vpop.f32.mrb[0].mxu0
  %1304 = vmatprep.mubr.f32.mxu0 0.0
  %1305 = vmatmul.mubr.f32.gmra.mrb[0].mxu0 %v475
  %v1306 = vpop.f32.mrb[0].mxu0
  %v1307 = vadd.f32 0.0, %v1306
  %v1308 = vpop.f32.mrb[0].mxu0
  %1309 = vmatprep.mubr.f32.mxu0 0.0
  %1310 = vmatmul.mubr.f32.gmra.mrb[0].mxu0 %v478
  %v1311 = vpop.f32.mrb[0].mxu0
  %v1312 = vadd.f32 0.0, %v1311
  %v1313 = vpop.f32.mrb[0].mxu0
  %1314 = vmatprep.mubr.f32.mxu0 0.0
  %1315 = vmatmul.mubr.f32.gmra.mrb[0].mxu0 %v481
  %v1316 = vpop.f32.mrb[0].mxu0
  %v1317 = vadd.f32 0.0, %v1316
  %v1318 = vpop.f32.mrb[0].mxu0
  %1319 = vmatprep.mubr.f32.mxu0 0.0
  %1320 = vmatmul.mubr.f32.gmra.mrb[0].mxu0 %v484
  %v1321 = vpop.f32.mrb[0].mxu0
  %v1322 = vadd.f32 0.0, %v1321
  %v1323 = vpop.f32.mrb[0].mxu0
  %1324 = vmatprep.mubr.f32.mxu0 0.0
  %1325 = vmatmul.mubr.f32.gmra.mrb[0].mxu0 %v487
  %v1326 = vpop.f32.mrb[0].mxu0
  %v1327 = vadd.f32 0.0, %v1326
  %v1328 = vpop.f32.mrb[0].mxu0
  %1329 = vmatprep.mubr.f32.mxu0 0.0
  %1330 = vmatmul.mubr.f32.gmra.mrb[0].mxu0 %v490
  %v1331 = vpop.f32.mrb[0].mxu0
  %v1332 = vadd.f32 0.0, %v1331
  %v1333 = vpop.f32.mrb[0].mxu0
  %1334 = vmatprep.mubr.f32.mxu0 0.0
  %1335 = vmatmul.mubr.f32.gmra.mrb[0].mxu0 %v493
  %v1336 = vpop.f32.mrb[0].mxu0
  %v1337 = vadd.f32 0.0, %v1336
  %v1338 = vpop.f32.mrb[0].mxu0
  %1339 = vmatprep.mubr.f32.mxu0 0.0
  %1340 = vmatmul.mubr.f32.gmra.mrb[0].mxu0 %v496
  %v1341 = vpop.f32.mrb[0].mxu0
  %v1342 = vadd.f32 0.0, %v1341
  %v1343 = vpop.f32.mrb[0].mxu0
  %1344 = vmatprep.mubr.f32.mxu0 0.0
  %1345 = vmatmul.mubr.f32.gmra.mrb[0].mxu0 %v499
  %v1346 = vpop.f32.mrb[0].mxu0
  %v1347 = vadd.f32 0.0, %v1346
  %v1348 = vpop.f32.mrb[0].mxu0
  %1349 = vmatprep.mubr.f32.mxu0 0.0
  %1350 = vmatmul.mubr.f32.gmra.mrb[0].mxu0 %v502
  %v1351 = vpop.f32.mrb[0].mxu0
  %v1352 = vadd.f32 0.0, %v1351
  %v1353 = vpop.f32.mrb[0].mxu0
  %1354 = vmatprep.mubr.f32.mxu0 0.0
  %1355 = vmatmul.mubr.f32.gmra.mrb[0].mxu0 %v505
  %v1356 = vpop.f32.mrb[0].mxu0
  %v1357 = vadd.f32 0.0, %v1356
  %v1358 = vpop.f32.mrb[0].mxu0
  %1359 = vmatprep.mubr.f32.mxu0 0.0
  %1360 = vmatmul.mubr.f32.gmra.mrb[0].mxu0 %v508
  %v1361 = vpop.f32.mrb[0].mxu0
  %v1362 = vadd.f32 0.0, %v1361
  %v1363 = vpop.f32.mrb[0].mxu0
  %1364 = vmatprep.mubr.f32.mxu0 0.0
  %1365 = vmatmul.mubr.f32.gmra.mrb[0].mxu0 %v511
  %v1366 = vpop.f32.mrb[0].mxu0
  %v1367 = vadd.f32 0.0, %v1366
  %v1368 = vpop.f32.mrb[0].mxu0
  %1369 = vmatprep.mubr.f32.mxu0 0.0
  %1370 = vmatmul.mubr.f32.gmra.mrb[0].mxu0 %v514
  %v1371 = vpop.f32.mrb[0].mxu0
  %v1372 = vadd.f32 0.0, %v1371
  %v1373 = vpop.f32.mrb[0].mxu0
  %1374 = vmatprep.mubr.f32.mxu0 0.0
  %1375 = vmatmul.mubr.f32.gmra.mrb[0].mxu0 %v517
  %v1376 = vpop.f32.mrb[0].mxu0
  %v1377 = vadd.f32 0.0, %v1376
  %v1378 = vpop.f32.mrb[0].mxu0
  %1379 = vmatprep.mubr.f32.mxu0 0.0
  %1380 = vmatmul.mubr.f32.gmra.mrb[0].mxu0 %v520
  %v1381 = vpop.f32.mrb[0].mxu0
  %v1382 = vadd.f32 0.0, %v1381
  %v1383 = vpop.f32.mrb[0].mxu0
  %1384 = vmatprep.mubr.f32.mxu0 0.0
  %1385 = vmatmul.mubr.f32.gmra.mrb[0].mxu0 %v523
  %v1386 = vpop.f32.mrb[0].mxu0
  %v1387 = vadd.f32 0.0, %v1386
  %v1388 = vpop.f32.mrb[0].mxu0
  %1389 = vmatprep.mubr.f32.mxu0 0.0
  %1390 = vmatmul.mubr.f32.gmra.mrb[0].mxu0 %v526
  %v1391 = vpop.f32.mrb[0].mxu0
  %v1392 = vadd.f32 0.0, %v1391
  %v1393 = vpop.f32.mrb[0].mxu0
  %1394 = vmatprep.mubr.f32.mxu0 0.0
  %1395 = vmatmul.mubr.f32.gmra.mrb[0].mxu0 %v529
  %v1396 = vpop.f32.mrb[0].mxu0
  %v1397 = vadd.f32 0.0, %v1396
  %v1398 = vpop.f32.mrb[0].mxu0
  %1399 = vmatprep.mubr.f32.mxu0 0.0
  %1400 = vmatmul.mubr.f32.gmra.mrb[0].mxu0 %v532
  %v1401 = vpop.f32.mrb[0].mxu0
  %v1402 = vadd.f32 0.0, %v1401
  %v1403 = vpop.f32.mrb[0].mxu0
  %1404 = vmatprep.mubr.f32.mxu0 0.0
  %1405 = vmatmul.mubr.f32.gmra.mrb[0].mxu0 %v535
  %v1406 = vpop.f32.mrb[0].mxu0
  %v1407 = vadd.f32 0.0, %v1406
  %v1408 = vpop.f32.mrb[0].mxu0
  %1409 = vmatprep.mubr.f32.mxu0 0.0
  %1410 = vmatmul.mubr.f32.gmra.mrb[0].mxu0 %v538
  %v1411 = vpop.f32.mrb[0].mxu0
  %v1412 = vadd.f32 0.0, %v1411
  %v1413 = vpop.f32.mrb[0].mxu0
  %1414 = vmatprep.mubr.f32.mxu0 0.0
  %1415 = vmatmul.mubr.f32.gmra.mrb[0].mxu0 %v541
  %v1416 = vpop.f32.mrb[0].mxu0
  %v1417 = vadd.f32 0.0, %v1416
  %v1418 = vpop.f32.mrb[0].mxu0
  %1419 = vmatprep.mubr.f32.mxu0 0.0
  %1420 = vmatmul.mubr.f32.gmra.mrb[0].mxu0 %v544
  %v1421 = vpop.f32.mrb[0].mxu0
  %v1422 = vadd.f32 0.0, %v1421
  %v1423 = vpop.f32.mrb[0].mxu0
  %1424 = vmatprep.mubr.f32.mxu0 0.0
  %1425 = vmatmul.mubr.f32.gmra.mrb[0].mxu0 %v547
  %v1426 = vpop.f32.mrb[0].mxu0
  %v1427 = vadd.f32 0.0, %v1426
  %v1428 = vpop.f32.mrb[0].mxu0
  %1429 = vmatprep.mubr.f32.mxu0 0.0
  %1430 = vmatmul.mubr.f32.gmra.mrb[0].mxu0 %v550
  %v1431 = vpop.f32.mrb[0].mxu0
  %v1432 = vadd.f32 0.0, %v1431
  %v1433 = vpop.f32.mrb[0].mxu0
  %1434 = vmatprep.mubr.f32.mxu0 0.0
  %1435 = vmatmul.mubr.f32.gmra.mrb[0].mxu0 %v553
  %v1436 = vpop.f32.mrb[0].mxu0
  %v1437 = vadd.f32 0.0, %v1436
  %v1438 = vpop.f32.mrb[0].mxu0
  %1439 = vmatprep.mubr.f32.mxu0 0.0
  %1440 = vmatmul.mubr.f32.gmra.mrb[0].mxu0 %v556
  %v1441 = vpop.f32.mrb[0].mxu0
  %v1442 = vadd.f32 0.0, %v1441
  %v1443 = vpop.f32.mrb[0].mxu0
  %1444 = vmatprep.mubr.f32.mxu0 0.0
  %1445 = vmatmul.mubr.f32.gmra.mrb[0].mxu0 %v559
  %v1446 = vpop.f32.mrb[0].mxu0
  %v1447 = vadd.f32 0.0, %v1446
  %v1448 = vpop.f32.mrb[0].mxu0
  %1449 = vmatprep.mubr.f32.mxu0 0.0
  %1450 = vmatmul.mubr.f32.gmra.mrb[0].mxu0 %v562
  %v1451 = vpop.f32.mrb[0].mxu0
  %v1452 = vadd.f32 0.0, %v1451
  %v1453 = vpop.f32.mrb[0].mxu0
  %1454 = vmatprep.mubr.f32.mxu0 0.0
  %1455 = vmatmul.mubr.f32.gmra.mrb[0].mxu0 %v565
  %v1456 = vpop.f32.mrb[0].mxu0
  %v1457 = vadd.f32 0.0, %v1456
  %v1458 = vpop.f32.mrb[0].mxu0
  %1459 = vmatprep.mubr.f32.mxu0 0.0
  %1460 = vmatmul.mubr.f32.gmra.mrb[0].mxu0 %v568
  %v1461 = vpop.f32.mrb[0].mxu0
  %v1462 = vadd.f32 0.0, %v1461
  %v1463 = vpop.f32.mrb[0].mxu0
  %1464 = vmatprep.mubr.f32.mxu0 0.0
  %1465 = vmatmul.mubr.f32.gmra.mrb[0].mxu0 %v571
  %v1466 = vpop.f32.mrb[0].mxu0
  %v1467 = vadd.f32 0.0, %v1466
  %v1468 = vpop.f32.mrb[0].mxu0
  %1469 = vmatprep.mubr.f32.mxu0 0.0
  %1470 = vmatmul.mubr.f32.gmra.mrb[0].mxu0 %v574
  %v1471 = vpop.f32.mrb[0].mxu0
  %v1472 = vadd.f32 0.0, %v1471
  %v1473 = vpop.f32.mrb[0].mxu0
  %1474 = vmatprep.mubr.f32.mxu0 0.0
  %1475 = vmatmul.mubr.f32.gmra.mrb[0].mxu0 %v577
  %v1476 = vpop.f32.mrb[0].mxu0
  %v1477 = vadd.f32 0.0, %v1476
  %v1478 = vpop.f32.mrb[0].mxu0
  %1479 = vmatprep.mubr.f32.mxu0 0.0
  %1480 = vmatmul.mubr.f32.gmra.mrb[0].mxu0 %v580
  %v1481 = vpop.f32.mrb[0].mxu0
  %v1482 = vadd.f32 0.0, %v1481
  %v1483 = vpop.f32.mrb[0].mxu0
  %1484 = vmatprep.mubr.f32.mxu0 0.0
  %1485 = vmatmul.mubr.f32.gmra.mrb[0].mxu0 %v583
  %v1486 = vpop.f32.mrb[0].mxu0
  %v1487 = vadd.f32 0.0, %v1486
  %v1488 = vpop.f32.mrb[0].mxu0
  %1489 = vmatprep.mubr.f32.mxu0 0.0
  %1490 = vmatmul.mubr.f32.gmra.mrb[0].mxu0 %v586
  %v1491 = vpop.f32.mrb[0].mxu0
  %v1492 = vadd.f32 0.0, %v1491
  %v1493 = vpop.f32.mrb[0].mxu0
  %1494 = vmatprep.mubr.f32.mxu0 0.0
  %1495 = vmatmul.mubr.f32.gmra.mrb[0].mxu0 %v589
  %v1496 = vpop.f32.mrb[0].mxu0
  %v1497 = vadd.f32 0.0, %v1496
  %v1498 = vpop.f32.mrb[0].mxu0
  %1499 = vmatprep.mubr.f32.mxu0 0.0
  %1500 = vmatmul.mubr.f32.gmra.mrb[0].mxu0 %v592
  %v1501 = vpop.f32.mrb[0].mxu0
  %v1502 = vadd.f32 0.0, %v1501
  %v1503 = vpop.f32.mrb[0].mxu0
  %1504 = vmatprep.mubr.f32.mxu0 0.0
  %1505 = vmatmul.mubr.f32.gmra.mrb[0].mxu0 %v595
  %v1506 = vpop.f32.mrb[0].mxu0
  %v1507 = vadd.f32 0.0, %v1506
  %v1508 = vpop.f32.mrb[0].mxu0
  %1509 = vmatprep.mubr.f32.mxu0 0.0
  %1510 = vmatmul.mubr.f32.gmra.mrb[0].mxu0 %v598
  %v1511 = vpop.f32.mrb[0].mxu0
  %v1512 = vadd.f32 0.0, %v1511
  %v1513 = vpop.f32.mrb[0].mxu0
  %1514 = vmatprep.mubr.f32.mxu0 0.0
  %1515 = vmatmul.mubr.f32.gmra.mrb[0].mxu0 %v601
  %v1516 = vpop.f32.mrb[0].mxu0
  %v1517 = vadd.f32 0.0, %v1516
  %v1518 = vpop.f32.mrb[0].mxu0
  %1519 = vmatprep.mubr.f32.mxu0 0.0
  %1520 = vmatmul.mubr.f32.gmra.mrb[0].mxu0 %v604
  %v1521 = vpop.f32.mrb[0].mxu0
  %v1522 = vadd.f32 0.0, %v1521
  %v1523 = vpop.f32.mrb[0].mxu0
  %1524 = vmatprep.mubr.f32.mxu0 0.0
  %1525 = vmatmul.mubr.f32.gmra.mrb[0].mxu0 %v607
  %v1526 = vpop.f32.mrb[0].mxu0
  %v1527 = vadd.f32 0.0, %v1526
  %v1528 = vpop.f32.mrb[0].mxu0
  %1529 = vmatprep.mubr.f32.mxu0 0.0
  %1530 = vmatmul.mubr.f32.gmra.mrb[0].mxu0 %v610
  %v1531 = vpop.f32.mrb[0].mxu0
  %v1532 = vadd.f32 0.0, %v1531
  %v1533 = vpop.f32.mrb[0].mxu0
  %1534 = vmatprep.mubr.f32.mxu0 0.0
  %1535 = vmatmul.mubr.f32.gmra.mrb[0].mxu0 %v613
  %v1536 = vpop.f32.mrb[0].mxu0
  %v1537 = vadd.f32 0.0, %v1536
  %v1538 = vpop.f32.mrb[0].mxu0
  %1539 = vmatprep.mubr.f32.mxu0 0.0
  %1540 = vmatmul.mubr.f32.gmra.mrb[0].mxu0 %v616
  %v1541 = vpop.f32.mrb[0].mxu0
  %v1542 = vadd.f32 0.0, %v1541
  %v1543 = vpop.f32.mrb[0].mxu0
  %1544 = vmatprep.mubr.f32.mxu0 0.0
  %1545 = vmatmul.mubr.f32.gmra.mrb[0].mxu0 %v619
  %v1546 = vpop.f32.mrb[0].mxu0
  %v1547 = vadd.f32 0.0, %v1546
  %v1548 = vpop.f32.mrb[0].mxu0
  %1549 = vmatprep.mubr.f32.mxu0 0.0
  %1550 = vmatmul.mubr.f32.gmra.mrb[0].mxu0 %v622
  %v1551 = vpop.f32.mrb[0].mxu0
  %v1552 = vadd.f32 0.0, %v1551
  %v1553 = vpop.f32.mrb[0].mxu0
  %1554 = vmatprep.mubr.f32.mxu0 0.0
  %1555 = vmatmul.mubr.f32.gmra.mrb[0].mxu0 %v625
  %v1556 = vpop.f32.mrb[0].mxu0
  %v1557 = vadd.f32 0.0, %v1556
  %v1558 = vpop.f32.mrb[0].mxu0
  %1559 = vmatprep.mubr.f32.mxu0 0.0
  %1560 = vmatmul.mubr.f32.gmra.mrb[0].mxu0 %v628
  %v1561 = vpop.f32.mrb[0].mxu0
  %v1562 = vadd.f32 0.0, %v1561
  %v1563 = vpop.f32.mrb[0].mxu0
  %1564 = vmatprep.mubr.f32.mxu0 0.0
  %1565 = vmatmul.mubr.f32.gmra.mrb[0].mxu0 %v631
  %v1566 = vpop.f32.mrb[0].mxu0
  %v1567 = vadd.f32 0.0, %v1566
  %v1568 = vpop.f32.mrb[0].mxu0
  %1569 = vmatprep.mubr.f32.mxu0 0.0
  %1570 = vmatmul.mubr.f32.gmra.mrb[0].mxu0 %v634
  %v1571 = vpop.f32.mrb[0].mxu0
  %v1572 = vadd.f32 0.0, %v1571
  %v1573 = vpop.f32.mrb[0].mxu0
  %1574 = vmatprep.mubr.f32.mxu0 0.0
  %1575 = vmatmul.mubr.f32.gmra.mrb[0].mxu0 %v637
  %v1576 = vpop.f32.mrb[0].mxu0
  %v1577 = vadd.f32 0.0, %v1576
  %v1578 = vpop.f32.mrb[0].mxu0
  %1579 = vmatprep.mubr.f32.mxu0 0.0
  %1580 = vmatmul.mubr.f32.gmra.mrb[0].mxu0 %v640
  %v1581 = vpop.f32.mrb[0].mxu0
  %v1582 = vadd.f32 0.0, %v1581
  %v1583 = vpop.f32.mrb[0].mxu0
  %1584 = vmatprep.mubr.f32.mxu0 0.0
  %1585 = vmatmul.mubr.f32.gmra.mrb[0].mxu0 %v643
  %v1586 = vpop.f32.mrb[0].mxu0
  %v1587 = vadd.f32 0.0, %v1586
  %v1588 = vpop.f32.mrb[0].mxu0
  %1589 = vmatprep.mubr.f32.mxu0 0.0
  %1590 = vmatmul.mubr.f32.gmra.mrb[0].mxu0 %v646
  %v1591 = vpop.f32.mrb[0].mxu0
  %v1592 = vadd.f32 0.0, %v1591
  %v1593 = vpop.f32.mrb[0].mxu0
  %1594 = vmatprep.mubr.f32.mxu0 0.0
  %1595 = vmatmul.mubr.f32.gmra.mrb[0].mxu0 %v649
  %v1596 = vpop.f32.mrb[0].mxu0
  %v1597 = vadd.f32 0.0, %v1596
  %v1598 = vpop.f32.mrb[0].mxu0
  %1599 = vmatprep.mubr.f32.mxu0 0.0
  %1600 = vmatmul.mubr.f32.gmra.mrb[0].mxu0 %v652
  %v1601 = vpop.f32.mrb[0].mxu0
  %v1602 = vadd.f32 0.0, %v1601
  %v1603 = vpop.f32.mrb[0].mxu0
  %1604 = vmatprep.mubr.f32.mxu0 0.0
  %1605 = vmatmul.mubr.f32.gmra.mrb[0].mxu0 %v655
  %v1606 = vpop.f32.mrb[0].mxu0
  %v1607 = vadd.f32 0.0, %v1606
  %v1608 = vpop.f32.mrb[0].mxu0
  %1609 = vmatprep.mubr.f32.mxu0 0.0
  %1610 = vmatmul.mubr.f32.gmra.mrb[0].mxu0 %v658
  %v1611 = vpop.f32.mrb[0].mxu0
  %v1612 = vadd.f32 0.0, %v1611
  %v1613 = vpop.f32.mrb[0].mxu0
  %1614 = vmatprep.mubr.f32.mxu0 0.0
  %1615 = vmatmul.mubr.f32.gmra.mrb[0].mxu0 %v661
  %v1616 = vpop.f32.mrb[0].mxu0
  %v1617 = vadd.f32 0.0, %v1616
  %v1618 = vpop.f32.mrb[0].mxu0
  %1619 = vmatprep.mubr.f32.mxu0 0.0
  %1620 = vmatmul.mubr.f32.gmra.mrb[0].mxu0 %v664
  %v1621 = vpop.f32.mrb[0].mxu0
  %v1622 = vadd.f32 0.0, %v1621
  %v1623 = vpop.f32.mrb[0].mxu0
  %1624 = vmatprep.mubr.f32.mxu0 0.0
  %1625 = vmatmul.mubr.f32.gmra.mrb[0].mxu0 %v667
  %v1626 = vpop.f32.mrb[0].mxu0
  %v1627 = vadd.f32 0.0, %v1626
  %v1628 = vpop.f32.mrb[0].mxu0
  %1629 = vmatprep.mubr.f32.mxu0 0.0
  %1630 = vmatmul.mubr.f32.gmra.mrb[0].mxu0 %v670
  %v1631 = vpop.f32.mrb[0].mxu0
  %v1632 = vadd.f32 0.0, %v1631
  %v1633 = vpop.f32.mrb[0].mxu0
  %1634 = vmatprep.mubr.f32.mxu0 0.0
  %1635 = vmatmul.mubr.f32.gmra.mrb[0].mxu0 %v673
  %v1636 = vpop.f32.mrb[0].mxu0
  %v1637 = vadd.f32 0.0, %v1636
  %v1638 = vpop.f32.mrb[0].mxu0
  %1639 = vmatprep.mubr.f32.mxu0 0.0
  %1640 = vmatmul.mubr.f32.gmra.mrb[0].mxu0 %v676
  %v1641 = vpop.f32.mrb[0].mxu0
  %v1642 = vadd.f32 0.0, %v1641
  %v1643 = vpop.f32.mrb[0].mxu0
  %1644 = vmatprep.mubr.f32.mxu0 0.0
  %1645 = vmatmul.mubr.f32.gmra.mrb[0].mxu0 %v679
  %v1646 = vpop.f32.mrb[0].mxu0
  %v1647 = vadd.f32 0.0, %v1646
  %v1648 = vpop.f32.mrb[0].mxu0
  %1649 = vmatprep.mubr.f32.mxu0 0.0
  %1650 = vmatmul.mubr.f32.gmra.mrb[0].mxu0 %v682
  %v1651 = vpop.f32.mrb[0].mxu0
  %v1652 = vadd.f32 0.0, %v1651
  %v1653 = vpop.f32.mrb[0].mxu0
  %1654 = vmatprep.mubr.f32.mxu0 0.0
  %1655 = vmatmul.mubr.f32.gmra.mrb[0].mxu0 %v685
  %v1656 = vpop.f32.mrb[0].mxu0
  %v1657 = vadd.f32 0.0, %v1656
  %v1658 = vpop.f32.mrb[0].mxu0
  %1659 = vmatprep.mubr.f32.mxu0 0.0
  %1660 = vmatmul.mubr.f32.gmra.mrb[0].mxu0 %v688
  %v1661 = vpop.f32.mrb[0].mxu0
  %v1662 = vadd.f32 0.0, %v1661
  %v1663 = vpop.f32.mrb[0].mxu0
  %1664 = vmatprep.mubr.f32.mxu0 0.0
  %1665 = vmatmul.mubr.f32.gmra.mrb[0].mxu0 %v691
  %v1666 = vpop.f32.mrb[0].mxu0
  %v1667 = vadd.f32 0.0, %v1666
  %v1668 = vpop.f32.mrb[0].mxu0
  %1669 = vmatprep.mubr.f32.mxu0 0.0
  %1670 = vmatmul.mubr.f32.gmra.mrb[0].mxu0 %v694
  %v1671 = vpop.f32.mrb[0].mxu0
  %v1672 = vadd.f32 0.0, %v1671
  %v1673 = vpop.f32.mrb[0].mxu0
  %1674 = vmatprep.mubr.f32.mxu0 0.0
  %1675 = vmatmul.mubr.f32.gmra.mrb[0].mxu0 %v697
  %v1676 = vpop.f32.mrb[0].mxu0
  %v1677 = vadd.f32 0.0, %v1676
  %v1678 = vpop.f32.mrb[0].mxu0
  %1679 = vmatprep.mubr.f32.mxu0 0.0
  %1680 = vmatmul.mubr.f32.gmra.mrb[0].mxu0 %v700
  %v1681 = vpop.f32.mrb[0].mxu0
  %v1682 = vadd.f32 0.0, %v1681
  %v1683 = vpop.f32.mrb[0].mxu0
  %1684 = vmatprep.mubr.f32.mxu0 0.0
  %1685 = vmatmul.mubr.f32.gmra.mrb[0].mxu0 %v703
  %v1686 = vpop.f32.mrb[0].mxu0
  %v1687 = vadd.f32 0.0, %v1686
  %v1688 = vpop.f32.mrb[0].mxu0
  %1689 = vmatprep.mubr.f32.mxu0 0.0
  %1690 = vmatmul.mubr.f32.gmra.mrb[0].mxu0 %v706
  %v1691 = vpop.f32.mrb[0].mxu0
  %v1692 = vadd.f32 0.0, %v1691
  %v1693 = vpop.f32.mrb[0].mxu0
  %1694 = vmatprep.mubr.f32.mxu0 0.0
  %1695 = vmatmul.mubr.f32.gmra.mrb[0].mxu0 %v709
  %v1696 = vpop.f32.mrb[0].mxu0
  %v1697 = vadd.f32 0.0, %v1696
  %v1698 = vpop.f32.mrb[0].mxu0
  %1699 = vmatprep.mubr.f32.mxu0 0.0
  %1700 = vmatmul.mubr.f32.gmra.mrb[0].mxu0 %v712
  %v1701 = vpop.f32.mrb[0].mxu0
  %v1702 = vadd.f32 0.0, %v1701
  %v1703 = vpop.f32.mrb[0].mxu0
  %1704 = vmatprep.mubr.f32.mxu0 0.0
  %1705 = vmatmul.mubr.f32.gmra.mrb[0].mxu0 %v715
  %v1706 = vpop.f32.mrb[0].mxu0
  %v1707 = vadd.f32 0.0, %v1706
  %v1708 = vpop.f32.mrb[0].mxu0
  %1709 = vmatprep.mubr.f32.mxu0 0.0
  %1710 = vmatmul.mubr.f32.gmra.mrb[0].mxu0 %v718
  %v1711 = vpop.f32.mrb[0].mxu0
  %v1712 = vadd.f32 0.0, %v1711
  %v1713 = vpop.f32.mrb[0].mxu0
  %1714 = vmatprep.mubr.f32.mxu0 0.0
  %1715 = vmatmul.mubr.f32.gmra.mrb[0].mxu0 %v721
  %v1716 = vpop.f32.mrb[0].mxu0
  %v1717 = vadd.f32 0.0, %v1716
  %v1718 = vpop.f32.mrb[0].mxu0
  %1719 = vmatprep.mubr.f32.mxu0 0.0
  %1720 = vmatmul.mubr.f32.gmra.mrb[0].mxu0 %v724
  %v1721 = vpop.f32.mrb[0].mxu0
  %v1722 = vadd.f32 0.0, %v1721
  %v1723 = vpop.f32.mrb[0].mxu0
  %1724 = vmatprep.mubr.f32.mxu0 0.0
  %1725 = vmatmul.mubr.f32.gmra.mrb[0].mxu0 %v727
  %v1726 = vpop.f32.mrb[0].mxu0
  %v1727 = vadd.f32 0.0, %v1726
  %v1728 = vpop.f32.mrb[0].mxu0
  %1729 = vmatprep.mubr.f32.mxu0 0.0
  %1730 = vmatmul.mubr.f32.gmra.mrb[0].mxu0 %v730
  %v1731 = vpop.f32.mrb[0].mxu0
  %v1732 = vadd.f32 0.0, %v1731
  %v1733 = vpop.f32.mrb[0].mxu0
  %1734 = vmatprep.mubr.f32.mxu0 0.0
  %1735 = vmatmul.mubr.f32.gmra.mrb[0].mxu0 %v733
  %v1736 = vpop.f32.mrb[0].mxu0
  %v1737 = vadd.f32 0.0, %v1736
  %v1738 = vpop.f32.mrb[0].mxu0
  %1739 = vmatprep.mubr.f32.mxu0 0.0
  %1740 = vmatmul.mubr.f32.gmra.mrb[0].mxu0 %v736
  %v1741 = vpop.f32.mrb[0].mxu0
  %v1742 = vadd.f32 0.0, %v1741
  %v1743 = vpop.f32.mrb[0].mxu0
  %1744 = vmatprep.mubr.f32.mxu0 0.0
  %1745 = vmatmul.mubr.f32.gmra.mrb[0].mxu0 %v739
  %v1746 = vpop.f32.mrb[0].mxu0
  %v1747 = vadd.f32 0.0, %v1746
  %v1748 = vpop.f32.mrb[0].mxu0
  %1749 = vmatprep.mubr.f32.mxu0 0.0
  %1750 = vmatmul.mubr.f32.gmra.mrb[0].mxu0 %v742
  %v1751 = vpop.f32.mrb[0].mxu0
  %v1752 = vadd.f32 0.0, %v1751
  %v1753 = vpop.f32.mrb[0].mxu0
  %1754 = vmatprep.mubr.f32.mxu0 0.0
  %1755 = vmatmul.mubr.f32.gmra.mrb[0].mxu0 %v745
  %v1756 = vpop.f32.mrb[0].mxu0
  %v1757 = vadd.f32 0.0, %v1756
  %v1758 = vpop.f32.mrb[0].mxu0
  %1759 = vmatprep.mubr.f32.mxu0 0.0
  %1760 = vmatmul.mubr.f32.gmra.mrb[0].mxu0 %v748
  %v1761 = vpop.f32.mrb[0].mxu0
  %v1762 = vadd.f32 0.0, %v1761
  %v1763 = vpop.f32.mrb[0].mxu0
  %1764 = vmatprep.mubr.f32.mxu0 0.0
  %1765 = vmatmul.mubr.f32.gmra.mrb[0].mxu0 %v751
  %v1766 = vpop.f32.mrb[0].mxu0
  %v1767 = vadd.f32 0.0, %v1766
  %v1768 = vpop.f32.mrb[0].mxu0
  %1769 = vmatprep.mubr.f32.mxu0 0.0
  %1770 = vmatmul.mubr.f32.gmra.mrb[0].mxu0 %v754
  %v1771 = vpop.f32.mrb[0].mxu0
  %v1772 = vadd.f32 0.0, %v1771
  %v1773 = vpop.f32.mrb[0].mxu0
  %1774 = vmatprep.mubr.f32.mxu0 0.0
  %1775 = vmatmul.mubr.f32.gmra.mrb[0].mxu0 %v757
  %v1776 = vpop.f32.mrb[0].mxu0
  %v1777 = vadd.f32 0.0, %v1776
  %v1778 = vpop.f32.mrb[0].mxu0
  %1779 = vmatprep.mubr.f32.mxu0 0.0
  %1780 = vmatmul.mubr.f32.gmra.mrb[0].mxu0 %v760
  %v1781 = vpop.f32.mrb[0].mxu0
  %v1782 = vadd.f32 0.0, %v1781
  %v1783 = vpop.f32.mrb[0].mxu0
  %1784 = vmatprep.mubr.f32.mxu0 0.0
  %1785 = vmatmul.mubr.f32.gmra.mrb[0].mxu0 %v763
  %v1786 = vpop.f32.mrb[0].mxu0
  %v1787 = vadd.f32 0.0, %v1786
  %v1788 = vpop.f32.mrb[0].mxu0
  %1789 = vmatprep.mubr.f32.mxu0 0.0
  %1790 = vmatmul.mubr.f32.gmra.mrb[0].mxu0 %v766
  %v1791 = vpop.f32.mrb[0].mxu0
  %v1792 = vadd.f32 0.0, %v1791
  %v1793 = vpop.f32.mrb[0].mxu0
  %1794 = vmatprep.mubr.f32.mxu0 0.0
  %1795 = vmatmul.mubr.f32.gmra.mrb[0].mxu0 %v769
  %v1796 = vpop.f32.mrb[0].mxu0
  %v1797 = vadd.f32 0.0, %v1796
  %v1798 = vpop.f32.mrb[0].mxu0
  %1799 = vmatprep.mubr.f32.mxu0 0.0
  %1800 = vmatmul.mubr.f32.gmra.mrb[0].mxu0 %v772
  %v1801 = vpop.f32.mrb[0].mxu0
  %v1802 = vadd.f32 0.0, %v1801
  %v1803 = vpop.f32.mrb[0].mxu0
  %1804 = vmatprep.mubr.f32.mxu0 0.0
  %1805 = vmatmul.mubr.f32.gmra.mrb[0].mxu0 %v775
  %v1806 = vpop.f32.mrb[0].mxu0
  %v1807 = vadd.f32 0.0, %v1806
  %v1808 = vpop.f32.mrb[0].mxu0
  %1809 = vmatprep.mubr.f32.mxu0 0.0
  %1810 = vmatmul.mubr.f32.gmra.mrb[0].mxu0 %v778
  %v1811 = vpop.f32.mrb[0].mxu0
  %v1812 = vadd.f32 0.0, %v1811
  %v1813 = vpop.f32.mrb[0].mxu0
  %1814 = vmatprep.mubr.f32.mxu0 0.0
  %1815 = vmatmul.mubr.f32.gmra.mrb[0].mxu0 %v781
  %v1816 = vpop.f32.mrb[0].mxu0
  %v1817 = vadd.f32 0.0, %v1816
  %v1818 = vpop.f32.mrb[0].mxu0
  %1819 = vmatprep.mubr.f32.mxu0 0.0
  %1820 = vmatmul.mubr.f32.gmra.mrb[0].mxu0 %v784
  %v1821 = vpop.f32.mrb[0].mxu0
  %v1822 = vadd.f32 0.0, %v1821
  %v1823 = vpop.f32.mrb[0].mxu0
  %1824 = vmatprep.mubr.f32.mxu0 0.0
  %1825 = vmatmul.mubr.f32.gmra.mrb[0].mxu0 %v787
  %v1826 = vpop.f32.mrb[0].mxu0
  %v1827 = vadd.f32 0.0, %v1826
  %v1828 = vpop.f32.mrb[0].mxu0
  %1829 = vmatprep.mubr.f32.mxu0 0.0
  %1830 = vmatmul.mubr.f32.gmra.mrb[0].mxu0 %v790
  %v1831 = vpop.f32.mrb[0].mxu0
  %v1832 = vadd.f32 0.0, %v1831
  %v1833 = vpop.f32.mrb[0].mxu0
  %1834 = vmatprep.mubr.f32.mxu0 0.0
  %1835 = vmatmul.mubr.f32.gmra.mrb[0].mxu0 %v793
  %v1836 = vpop.f32.mrb[0].mxu0
  %v1837 = vadd.f32 0.0, %v1836
  %v1838 = vpop.f32.mrb[0].mxu0
  %1839 = vmatprep.mubr.f32.mxu0 0.0
  %1840 = vmatmul.mubr.f32.gmra.mrb[0].mxu0 %v796
  %v1841 = vpop.f32.mrb[0].mxu0
  %v1842 = vadd.f32 0.0, %v1841
  %v1843 = vpop.f32.mrb[0].mxu0
  %1844 = vmatprep.mubr.f32.mxu0 0.0
  %1845 = vmatmul.mubr.f32.gmra.mrb[0].mxu0 %v799
  %v1846 = vpop.f32.mrb[0].mxu0
  %v1847 = vadd.f32 0.0, %v1846
  %v1848 = vpop.f32.mrb[0].mxu0
  %1849 = vdwg.mxu0
  %v1850 = vmax.f32 %v872, %v1117
  %v1851 = vmax.f32 %v1850, %v1362
  %v1852 = vmax.f32 %v1851, %v1607
  %v1853 = vmax.f32 %v877, %v1122
  %v1854 = vmax.f32 %v1853, %v1367
  %v1855 = vmax.f32 %v1854, %v1612
  %v1856 = vmax.f32 %v882, %v1127
  %v1857 = vmax.f32 %v1856, %v1372
  %v1858 = vmax.f32 %v1857, %v1617
  %v1859 = vmax.f32 %v887, %v1132
  %v1860 = vmax.f32 %v1859, %v1377
  %v1861 = vmax.f32 %v1860, %v1622
  %v1862 = vmax.f32 %v892, %v1137
  %v1863 = vmax.f32 %v1862, %v1382
  %v1864 = vmax.f32 %v1863, %v1627
  %v1865 = vmax.f32 %v897, %v1142
  %v1866 = vmax.f32 %v1865, %v1387
  %v1867 = vmax.f32 %v1866, %v1632
  %v1868 = vmax.f32 %v902, %v1147
  %v1869 = vmax.f32 %v1868, %v1392
  %v1870 = vmax.f32 %v1869, %v1637
  %v1871 = vmax.f32 %v907, %v1152
  %v1872 = vmax.f32 %v1871, %v1397
  %v1873 = vmax.f32 %v1872, %v1642
  %v1874 = vmax.f32 %v912, %v1157
  %v1875 = vmax.f32 %v1874, %v1402
  %v1876 = vmax.f32 %v1875, %v1647
  %v1877 = vmax.f32 %v917, %v1162
  %v1878 = vmax.f32 %v1877, %v1407
  %v1879 = vmax.f32 %v1878, %v1652
  %v1880 = vmax.f32 %v922, %v1167
  %v1881 = vmax.f32 %v1880, %v1412
  %v1882 = vmax.f32 %v1881, %v1657
  %v1883 = vmax.f32 %v927, %v1172
  %v1884 = vmax.f32 %v1883, %v1417
  %v1885 = vmax.f32 %v1884, %v1662
  %v1886 = vmax.f32 %v932, %v1177
  %v1887 = vmax.f32 %v1886, %v1422
  %v1888 = vmax.f32 %v1887, %v1667
  %v1889 = vmax.f32 %v937, %v1182
  %v1890 = vmax.f32 %v1889, %v1427
  %v1891 = vmax.f32 %v1890, %v1672
  %v1892 = vmax.f32 %v942, %v1187
  %v1893 = vmax.f32 %v1892, %v1432
  %v1894 = vmax.f32 %v1893, %v1677
  %v1895 = vmax.f32 %v947, %v1192
  %v1896 = vmax.f32 %v1895, %v1437
  %v1897 = vmax.f32 %v1896, %v1682
  %v1898 = vmax.f32 %v952, %v1197
  %v1899 = vmax.f32 %v1898, %v1442
  %v1900 = vmax.f32 %v1899, %v1687
  %v1901 = vmax.f32 %v957, %v1202
  %v1902 = vmax.f32 %v1901, %v1447
  %v1903 = vmax.f32 %v1902, %v1692
  %v1904 = vmax.f32 %v962, %v1207
  %v1905 = vmax.f32 %v1904, %v1452
  %v1906 = vmax.f32 %v1905, %v1697
  %v1907 = vmax.f32 %v967, %v1212
  %v1908 = vmax.f32 %v1907, %v1457
  %v1909 = vmax.f32 %v1908, %v1702
  %v1910 = vmax.f32 %v972, %v1217
  %v1911 = vmax.f32 %v1910, %v1462
  %v1912 = vmax.f32 %v1911, %v1707
  %v1913 = vmax.f32 %v977, %v1222
  %v1914 = vmax.f32 %v1913, %v1467
  %v1915 = vmax.f32 %v1914, %v1712
  %v1916 = vmax.f32 %v982, %v1227
  %v1917 = vmax.f32 %v1916, %v1472
  %v1918 = vmax.f32 %v1917, %v1717
  %v1919 = vmax.f32 %v987, %v1232
  %v1920 = vmax.f32 %v1919, %v1477
  %v1921 = vmax.f32 %v1920, %v1722
  %v1922 = vmax.f32 %v992, %v1237
  %v1923 = vmax.f32 %v1922, %v1482
  %v1924 = vmax.f32 %v1923, %v1727
  %v1925 = vmax.f32 %v997, %v1242
  %v1926 = vmax.f32 %v1925, %v1487
  %v1927 = vmax.f32 %v1926, %v1732
  %v1928 = vmax.f32 %v1002, %v1247
  %v1929 = vmax.f32 %v1928, %v1492
  %v1930 = vmax.f32 %v1929, %v1737
  %v1931 = vmax.f32 %v1007, %v1252
  %v1932 = vmax.f32 %v1931, %v1497
  %v1933 = vmax.f32 %v1932, %v1742
  %v1934 = vmax.f32 %v1012, %v1257
  %v1935 = vmax.f32 %v1934, %v1502
  %v1936 = vmax.f32 %v1935, %v1747
  %v1937 = vmax.f32 %v1017, %v1262
  %v1938 = vmax.f32 %v1937, %v1507
  %v1939 = vmax.f32 %v1938, %v1752
  %v1940 = vmax.f32 %v1022, %v1267
  %v1941 = vmax.f32 %v1940, %v1512
  %v1942 = vmax.f32 %v1941, %v1757
  %v1943 = vmax.f32 %v1027, %v1272
  %v1944 = vmax.f32 %v1943, %v1517
  %v1945 = vmax.f32 %v1944, %v1762
  %v1946 = vmax.f32 %v1032, %v1277
  %v1947 = vmax.f32 %v1946, %v1522
  %v1948 = vmax.f32 %v1947, %v1767
  %v1949 = vmax.f32 %v1037, %v1282
  %v1950 = vmax.f32 %v1949, %v1527
  %v1951 = vmax.f32 %v1950, %v1772
  %v1952 = vmax.f32 %v1042, %v1287
  %v1953 = vmax.f32 %v1952, %v1532
  %v1954 = vmax.f32 %v1953, %v1777
  %v1955 = vmax.f32 %v1047, %v1292
  %v1956 = vmax.f32 %v1955, %v1537
  %v1957 = vmax.f32 %v1956, %v1782
  %v1958 = vmax.f32 %v1052, %v1297
  %v1959 = vmax.f32 %v1958, %v1542
  %v1960 = vmax.f32 %v1959, %v1787
  %v1961 = vmax.f32 %v1057, %v1302
  %v1962 = vmax.f32 %v1961, %v1547
  %v1963 = vmax.f32 %v1962, %v1792
  %v1964 = vmax.f32 %v1062, %v1307
  %v1965 = vmax.f32 %v1964, %v1552
  %v1966 = vmax.f32 %v1965, %v1797
  %v1967 = vmax.f32 %v1067, %v1312
  %v1968 = vmax.f32 %v1967, %v1557
  %v1969 = vmax.f32 %v1968, %v1802
  %v1970 = vmax.f32 %v1072, %v1317
  %v1971 = vmax.f32 %v1970, %v1562
  %v1972 = vmax.f32 %v1971, %v1807
  %v1973 = vmax.f32 %v1077, %v1322
  %v1974 = vmax.f32 %v1973, %v1567
  %v1975 = vmax.f32 %v1974, %v1812
  %v1976 = vmax.f32 %v1082, %v1327
  %v1977 = vmax.f32 %v1976, %v1572
  %v1978 = vmax.f32 %v1977, %v1817
  %v1979 = vmax.f32 %v1087, %v1332
  %v1980 = vmax.f32 %v1979, %v1577
  %v1981 = vmax.f32 %v1980, %v1822
  %v1982 = vmax.f32 %v1092, %v1337
  %v1983 = vmax.f32 %v1982, %v1582
  %v1984 = vmax.f32 %v1983, %v1827
  %v1985 = vmax.f32 %v1097, %v1342
  %v1986 = vmax.f32 %v1985, %v1587
  %v1987 = vmax.f32 %v1986, %v1832
  %v1988 = vmax.f32 %v1102, %v1347
  %v1989 = vmax.f32 %v1988, %v1592
  %v1990 = vmax.f32 %v1989, %v1837
  %v1991 = vmax.f32 %v1107, %v1352
  %v1992 = vmax.f32 %v1991, %v1597
  %v1993 = vmax.f32 %v1992, %v1842
  %v1994 = vmax.f32 %v1112, %v1357
  %v1995 = vmax.f32 %v1994, %v1602
  %v1996 = vmax.f32 %v1995, %v1847
  %v1997 = vld [vmem:[%s2] sm:$0x1]
  %v1999 = vlaneseq
  %v2000 = vshrl.u32 %v1999, 7
  %v2001 = vsub.s32 0, %v2000
  %v2002 = vrot.slane %v1997, %v2001
  %v2004 = vadd.f32 %v1852, %v2002
  %v2005 = vadd.f32 %v1855, %v2002
  %v2006 = vadd.f32 %v1858, %v2002
  %v2007 = vadd.f32 %v1861, %v2002
  %v2008 = vadd.f32 %v1864, %v2002
  %v2009 = vadd.f32 %v1867, %v2002
  %v2010 = vadd.f32 %v1870, %v2002
  %v2011 = vadd.f32 %v1873, %v2002
  %v2012 = vadd.f32 %v1876, %v2002
  %v2013 = vadd.f32 %v1879, %v2002
  %v2014 = vadd.f32 %v1882, %v2002
  %v2015 = vadd.f32 %v1885, %v2002
  %v2016 = vadd.f32 %v1888, %v2002
  %v2017 = vadd.f32 %v1891, %v2002
  %v2018 = vadd.f32 %v1894, %v2002
  %v2019 = vadd.f32 %v1897, %v2002
  %v2020 = vadd.f32 %v1900, %v2002
  %v2021 = vadd.f32 %v1903, %v2002
  %v2022 = vadd.f32 %v1906, %v2002
  %v2023 = vadd.f32 %v1909, %v2002
  %v2024 = vadd.f32 %v1912, %v2002
  %v2025 = vadd.f32 %v1915, %v2002
  %v2026 = vadd.f32 %v1918, %v2002
  %v2027 = vadd.f32 %v1921, %v2002
  %v2028 = vadd.f32 %v1924, %v2002
  %v2029 = vadd.f32 %v1927, %v2002
  %v2030 = vadd.f32 %v1930, %v2002
  %v2031 = vadd.f32 %v1933, %v2002
  %v2032 = vadd.f32 %v1936, %v2002
  %v2033 = vadd.f32 %v1939, %v2002
  %v2034 = vadd.f32 %v1942, %v2002
  %v2035 = vadd.f32 %v1945, %v2002
  %v2036 = vadd.f32 %v1948, %v2002
  %v2037 = vadd.f32 %v1951, %v2002
  %v2038 = vadd.f32 %v1954, %v2002
  %v2039 = vadd.f32 %v1957, %v2002
  %v2040 = vadd.f32 %v1960, %v2002
  %v2041 = vadd.f32 %v1963, %v2002
  %v2042 = vadd.f32 %v1966, %v2002
  %v2043 = vadd.f32 %v1969, %v2002
  %v2044 = vadd.f32 %v1972, %v2002
  %v2045 = vadd.f32 %v1975, %v2002
  %v2046 = vadd.f32 %v1978, %v2002
  %v2047 = vadd.f32 %v1981, %v2002
  %v2048 = vadd.f32 %v1984, %v2002
  %v2049 = vadd.f32 %v1987, %v2002
  %v2050 = vadd.f32 %v1990, %v2002
  %v2051 = vadd.f32 %v1993, %v2002
  %v2052 = vadd.f32 %v1996, %v2002
  %v2053 = vmax.f32 %v2004, 0.0
  %v2054 = vmax.f32 %v2005, 0.0
  %v2055 = vmax.f32 %v2006, 0.0
  %v2056 = vmax.f32 %v2007, 0.0
  %v2057 = vmax.f32 %v2008, 0.0
  %v2058 = vmax.f32 %v2009, 0.0
  %v2059 = vmax.f32 %v2010, 0.0
  %v2060 = vmax.f32 %v2011, 0.0
  %v2061 = vmax.f32 %v2012, 0.0
  %v2062 = vmax.f32 %v2013, 0.0
  %v2063 = vmax.f32 %v2014, 0.0
  %v2064 = vmax.f32 %v2015, 0.0
  %v2065 = vmax.f32 %v2016, 0.0
  %v2066 = vmax.f32 %v2017, 0.0
  %v2067 = vmax.f32 %v2018, 0.0
  %v2068 = vmax.f32 %v2019, 0.0
  %v2069 = vmax.f32 %v2020, 0.0
  %v2070 = vmax.f32 %v2021, 0.0
  %v2071 = vmax.f32 %v2022, 0.0
  %v2072 = vmax.f32 %v2023, 0.0
  %v2073 = vmax.f32 %v2024, 0.0
  %v2074 = vmax.f32 %v2025, 0.0
  %v2075 = vmax.f32 %v2026, 0.0
  %v2076 = vmax.f32 %v2027, 0.0
  %v2077 = vmax.f32 %v2028, 0.0
  %v2078 = vmax.f32 %v2029, 0.0
  %v2079 = vmax.f32 %v2030, 0.0
  %v2080 = vmax.f32 %v2031, 0.0
  %v2081 = vmax.f32 %v2032, 0.0
  %v2082 = vmax.f32 %v2033, 0.0
  %v2083 = vmax.f32 %v2034, 0.0
  %v2084 = vmax.f32 %v2035, 0.0
  %v2085 = vmax.f32 %v2036, 0.0
  %v2086 = vmax.f32 %v2037, 0.0
  %v2087 = vmax.f32 %v2038, 0.0
  %v2088 = vmax.f32 %v2039, 0.0
  %v2089 = vmax.f32 %v2040, 0.0
  %v2090 = vmax.f32 %v2041, 0.0
  %v2091 = vmax.f32 %v2042, 0.0
  %v2092 = vmax.f32 %v2043, 0.0
  %v2093 = vmax.f32 %v2044, 0.0
  %v2094 = vmax.f32 %v2045, 0.0
  %v2095 = vmax.f32 %v2046, 0.0
  %v2096 = vmax.f32 %v2047, 0.0
  %v2097 = vmax.f32 %v2048, 0.0
  %v2098 = vmax.f32 %v2049, 0.0
  %v2099 = vmax.f32 %v2050, 0.0
  %v2100 = vmax.f32 %v2051, 0.0
  %v2101 = vmax.f32 %v2052, 0.0
  %2102 = vst [vmem:[%s3] sm:$0xff] %v2053
  %2103 = vst [vmem:[%s3 + $0x8] sm:$0xff] %v2054
  %2104 = vst [vmem:[%s3 + $0x10] sm:$0xff] %v2055
  %2105 = vst [vmem:[%s3 + $0x18] sm:$0xff] %v2056
  %2106 = vst [vmem:[%s3 + $0x20] sm:$0xff] %v2057
  %2107 = vst [vmem:[%s3 + $0x28] sm:$0xff] %v2058
  %2108 = vst [vmem:[%s3 + $0x30] sm:$0xff] %v2059
  %2109 = vst [vmem:[%s3 + $0x38] sm:$0xff] %v2060
  %2110 = vst [vmem:[%s3 + $0x40] sm:$0xff] %v2061
  %2111 = vst [vmem:[%s3 + $0x48] sm:$0xff] %v2062
  %2112 = vst [vmem:[%s3 + $0x50] sm:$0xff] %v2063
  %2113 = vst [vmem:[%s3 + $0x58] sm:$0xff] %v2064
  %2114 = vst [vmem:[%s3 + $0x60] sm:$0xff] %v2065
  %2115 = vst [vmem:[%s3 + $0x68] sm:$0xff] %v2066
  %2116 = vst [vmem:[%s3 + $0x70] sm:$0xff] %v2067
  %2117 = vst [vmem:[%s3 + $0x78] sm:$0xff] %v2068
  %2118 = vst [vmem:[%s3 + $0x80] sm:$0xff] %v2069
  %2119 = vst [vmem:[%s3 + $0x88] sm:$0xff] %v2070
  %2120 = vst [vmem:[%s3 + $0x90] sm:$0xff] %v2071
  %2121 = vst [vmem:[%s3 + $0x98] sm:$0xff] %v2072
  %2122 = vst [vmem:[%s3 + $0xa0] sm:$0xff] %v2073
  %2123 = vst [vmem:[%s3 + $0xa8] sm:$0xff] %v2074
  %2124 = vst [vmem:[%s3 + $0xb0] sm:$0xff] %v2075
  %2125 = vst [vmem:[%s3 + $0xb8] sm:$0xff] %v2076
  %2126 = vst [vmem:[%s3 + $0xc0] sm:$0xff] %v2077
  %2127 = vst [vmem:[%s3 + $0xc8] sm:$0xff] %v2078
  %2128 = vst [vmem:[%s3 + $0xd0] sm:$0xff] %v2079
  %2129 = vst [vmem:[%s3 + $0xd8] sm:$0xff] %v2080
  %2130 = vst [vmem:[%s3 + $0xe0] sm:$0xff] %v2081
  %2131 = vst [vmem:[%s3 + $0xe8] sm:$0xff] %v2082
  %2132 = vst [vmem:[%s3 + $0xf0] sm:$0xff] %v2083
  %2133 = vst [vmem:[%s3 + $0xf8] sm:$0xff] %v2084
  %2134 = vst [vmem:[%s3 + $0x100] sm:$0xff] %v2085
  %2135 = vst [vmem:[%s3 + $0x108] sm:$0xff] %v2086
  %2136 = vst [vmem:[%s3 + $0x110] sm:$0xff] %v2087
  %2137 = vst [vmem:[%s3 + $0x118] sm:$0xff] %v2088
  %2138 = vst [vmem:[%s3 + $0x120] sm:$0xff] %v2089
  %2139 = vst [vmem:[%s3 + $0x128] sm:$0xff] %v2090
  %2140 = vst [vmem:[%s3 + $0x130] sm:$0xff] %v2091
  %2141 = vst [vmem:[%s3 + $0x138] sm:$0xff] %v2092
  %2142 = vst [vmem:[%s3 + $0x140] sm:$0xff] %v2093
  %2143 = vst [vmem:[%s3 + $0x148] sm:$0xff] %v2094
  %2144 = vst [vmem:[%s3 + $0x150] sm:$0xff] %v2095
  %2145 = vst [vmem:[%s3 + $0x158] sm:$0xff] %v2096
  %2146 = vst [vmem:[%s3 + $0x160] sm:$0xff] %v2097
  %2147 = vst [vmem:[%s3 + $0x168] sm:$0xff] %v2098
  %2148 = vst [vmem:[%s3 + $0x170] sm:$0xff] %v2099
  %2149 = vst [vmem:[%s3 + $0x178] sm:$0xff] %v2100
  %2150 = vst [vmem:[%s3 + $0x180] sm:$0xff] %v2101
  // Predicated region
  $region14: #{cnn_forward.3} parent=0 // pred_check
    _
  $region15: #{cnn_forward.3} parent=0 // pred_check_branch
    %2152 = sbr.rel (0) target = $region17
  $region16: #{cnn_forward.3} parent=0 // pred_region
    _
  $region17: #{cnn_forward.3} parent=0 // pred_fallthru
    _
  // Predicated region
  $region18: #{cnn_forward.3} parent=0 // pred_check
    _
  $region19: #{cnn_forward.3} parent=0 // pred_check_branch
    %2154 = sbr.rel (0) target = $region21
  $region20: #{cnn_forward.3} parent=0 // pred_region
    _
  $region21: #{cnn_forward.3} parent=0 // pred_fallthru
    _

// kernel: cnn_forward.4
$region0: #{cnn_forward.4}
  #allocation0 [shape = 'u32[]', space=smem, size = 0x4, offset = 0x4, fixed_abs, tag = 'smem constant byte address 0x4 - core index']
  #allocation1 [shape = 'u32[144,128]{1,0:T(1,128)}', space=vmem, size = 0x12000, scoped, tag = 'internal scratch']
  %s0 = inlined_call_operand.vmem [shape: f32[4,104,36], index: 0, kind: input, shape index: {}]
  %s1 = inlined_call_operand.vmem [shape: f32[36,128], index: 1, kind: input, shape index: {}]
  %s2 = inlined_call_operand.vmem [shape: f32[1,128], index: 2, kind: input, shape index: {}]
  %s3 = inlined_call_operand.vmem [shape: f32[104,128], index: 3, kind: output, shape index: {}]
  %s4 = sld [smem:[#allocation0]]
  $region22: #{cnn_forward.4} parent=0
    _
  %s6 = ssub.s32 1, %s4
  %s7 = scalar_select 0, %s6, %s4
  // Predicated region
  $region2: #{cnn_forward.4} parent=0 // pred_check
    _
  $region3: #{cnn_forward.4} parent=0 // pred_check_branch
    %9 = sbr.rel (0) target = $region5
  $region4: #{cnn_forward.4} parent=0 // pred_region
    _
  $region5: #{cnn_forward.4} parent=0 // pred_fallthru
    _
  // Predicated region
  $region6: #{cnn_forward.4} parent=0 // pred_check
    _
  $region7: #{cnn_forward.4} parent=0 // pred_check_branch
    %11 = sbr.rel (0) target = $region9
  $region8: #{cnn_forward.4} parent=0 // pred_region
    _
  $region9: #{cnn_forward.4} parent=0 // pred_fallthru
    _
  // Predicated region
  $region10: #{cnn_forward.4} parent=0 // pred_check
    _
  $region11: #{cnn_forward.4} parent=0 // pred_check_branch
    %13 = sbr.rel (0) target = $region13
  $region12: #{cnn_forward.4} parent=0 // pred_region
    _
  $region13: #{cnn_forward.4} parent=0 // pred_fallthru
    _
  %v14 = vld [vmem:[%s1] sm:$0xff]
  %v15 = vld [vmem:[%s1 + $0x8] sm:$0xff]
  %v16 = vld [vmem:[%s1 + $0x10] sm:$0xff]
  %v17 = vld [vmem:[%s1 + $0x18] sm:$0xff]
  %v18 = vld [vmem:[%s1 + $0x20] sm:$0xf]
  %v19 = vld [vmem:[%s0] sm:$0xff]
  %v20 = vld [vmem:[%s0 + $0x8] sm:$0xff]
  %v21 = vld [vmem:[%s0 + $0x10] sm:$0xff]
  %v22 = vld [vmem:[%s0 + $0x18] sm:$0xff]
  %v23 = vld [vmem:[%s0 + $0x20] sm:$0xff]
  %v24 = vld [vmem:[%s0 + $0x28] sm:$0xff]
  %v25 = vld [vmem:[%s0 + $0x30] sm:$0xff]
  %v26 = vld [vmem:[%s0 + $0x38] sm:$0xff]
  %v27 = vld [vmem:[%s0 + $0x40] sm:$0xff]
  %v28 = vld [vmem:[%s0 + $0x48] sm:$0xff]
  %v29 = vld [vmem:[%s0 + $0x50] sm:$0xff]
  %v30 = vld [vmem:[%s0 + $0x58] sm:$0xff]
  %v31 = vld [vmem:[%s0 + $0x60] sm:$0xff]
  %v32 = vld [vmem:[%s0 + $0x68] sm:$0xff]
  %v33 = vld [vmem:[%s0 + $0x70] sm:$0xff]
  %v34 = vld [vmem:[%s0 + $0x78] sm:$0xff]
  %v35 = vld [vmem:[%s0 + $0x80] sm:$0xff]
  %v36 = vld [vmem:[%s0 + $0x88] sm:$0xff]
  %v37 = vld [vmem:[%s0 + $0x90] sm:$0xff]
  %v38 = vld [vmem:[%s0 + $0x98] sm:$0xff]
  %v39 = vld [vmem:[%s0 + $0xa0] sm:$0xff]
  %v40 = vld [vmem:[%s0 + $0xa8] sm:$0xff]
  %v41 = vld [vmem:[%s0 + $0xb0] sm:$0xff]
  %v42 = vld [vmem:[%s0 + $0xb8] sm:$0xff]
  %v43 = vld [vmem:[%s0 + $0xc0] sm:$0xff]
  %v44 = vld [vmem:[%s0 + $0xc8] sm:$0xff]
  %v45 = vld [vmem:[%s0 + $0xd0] sm:$0xff]
  %v46 = vld [vmem:[%s0 + $0xd8] sm:$0xff]
  %v47 = vld [vmem:[%s0 + $0xe0] sm:$0xff]
  %v48 = vld [vmem:[%s0 + $0xe8] sm:$0xff]
  %v49 = vld [vmem:[%s0 + $0xf0] sm:$0xff]
  %v50 = vld [vmem:[%s0 + $0xf8] sm:$0xff]
  %v51 = vld [vmem:[%s0 + $0x100] sm:$0xff]
  %v52 = vld [vmem:[%s0 + $0x108] sm:$0xff]
  %v53 = vld [vmem:[%s0 + $0x110] sm:$0xff]
  %v54 = vld [vmem:[%s0 + $0x118] sm:$0xff]
  %v55 = vld [vmem:[%s0 + $0x120] sm:$0xff]
  %v56 = vld [vmem:[%s0 + $0x128] sm:$0xff]
  %v57 = vld [vmem:[%s0 + $0x130] sm:$0xff]
  %v58 = vld [vmem:[%s0 + $0x138] sm:$0xff]
  %v59 = vld [vmem:[%s0 + $0x140] sm:$0xff]
  %v60 = vld [vmem:[%s0 + $0x148] sm:$0xff]
  %v61 = vld [vmem:[%s0 + $0x150] sm:$0xff]
  %v62 = vld [vmem:[%s0 + $0x158] sm:$0xff]
  %v63 = vld [vmem:[%s0 + $0x160] sm:$0xff]
  %v64 = vld [vmem:[%s0 + $0x168] sm:$0xff]
  %v65 = vld [vmem:[%s0 + $0x170] sm:$0xff]
  %v66 = vld [vmem:[%s0 + $0x178] sm:$0xff]
  %v67 = vld [vmem:[%s0 + $0x180] sm:$0xff]
  %v68 = vld [vmem:[%s0 + $0x188] sm:$0xff]
  %v69 = vld [vmem:[%s0 + $0x190] sm:$0xff]
  %v70 = vld [vmem:[%s0 + $0x198] sm:$0xff]
  %vm71 = vcmask 293888
  %v73 = vsel %vm71, %v19, 0
  %v76 = vsel %vm71, %v20, 0
  %v79 = vsel %vm71, %v21, 0
  %v82 = vsel %vm71, %v22, 0
  %v85 = vsel %vm71, %v23, 0
  %v88 = vsel %vm71, %v24, 0
  %v91 = vsel %vm71, %v25, 0
  %v94 = vsel %vm71, %v26, 0
  %v97 = vsel %vm71, %v27, 0
  %v100 = vsel %vm71, %v28, 0
  %v103 = vsel %vm71, %v29, 0
  %v106 = vsel %vm71, %v30, 0
  %v109 = vsel %vm71, %v31, 0
  %v112 = vsel %vm71, %v32, 0
  %v115 = vsel %vm71, %v33, 0
  %v118 = vsel %vm71, %v34, 0
  %v121 = vsel %vm71, %v35, 0
  %v124 = vsel %vm71, %v36, 0
  %v127 = vsel %vm71, %v37, 0
  %v130 = vsel %vm71, %v38, 0
  %v133 = vsel %vm71, %v39, 0
  %v136 = vsel %vm71, %v40, 0
  %v139 = vsel %vm71, %v41, 0
  %v142 = vsel %vm71, %v42, 0
  %v145 = vsel %vm71, %v43, 0
  %v148 = vsel %vm71, %v44, 0
  %v151 = vsel %vm71, %v45, 0
  %v154 = vsel %vm71, %v46, 0
  %v157 = vsel %vm71, %v47, 0
  %v160 = vsel %vm71, %v48, 0
  %v163 = vsel %vm71, %v49, 0
  %v166 = vsel %vm71, %v50, 0
  %v169 = vsel %vm71, %v51, 0
  %v172 = vsel %vm71, %v52, 0
  %v175 = vsel %vm71, %v53, 0
  %v178 = vsel %vm71, %v54, 0
  %v181 = vsel %vm71, %v55, 0
  %v184 = vsel %vm71, %v56, 0
  %v187 = vsel %vm71, %v57, 0
  %v190 = vsel %vm71, %v58, 0
  %v193 = vsel %vm71, %v59, 0
  %v196 = vsel %vm71, %v60, 0
  %v199 = vsel %vm71, %v61, 0
  %v202 = vsel %vm71, %v62, 0
  %v205 = vsel %vm71, %v63, 0
  %v208 = vsel %vm71, %v64, 0
  %v211 = vsel %vm71, %v65, 0
  %v214 = vsel %vm71, %v66, 0
  %v217 = vsel %vm71, %v67, 0
  %v220 = vsel %vm71, %v68, 0
  %v223 = vsel %vm71, %v69, 0
  %v226 = vsel %vm71, %v70, 0
  %vm228 = vcmask 1043456
  %v230 = vsel %vm228, %v18, 0
  %232 = vmatprep.subr.mxu0 0.0
  %233 = vmatpush1.msra.mxu0 %v14
  %234 = vmatprep.subr.mxu0 0.0
  %235 = vmatpush1.msra.mxu0 %v15
  %236 = vmatprep.subr.mxu0 0.0
  %237 = vmatpush1.msra.mxu0 %v16
  %238 = vmatprep.subr.mxu0 0.0
  %239 = vmatpush1.msra.mxu0 %v17
  %240 = vmatprep.subr.mxu0 0.0
  %241 = vmatpush1.msra.mxu0 %v230
  %242 = vmatprep.subr.mxu0 0.0
  %243 = vmatpush1.msra.mxu0 0.0
  %244 = vmatprep.subr.mxu0 0.0
  %245 = vmatpush1.msra.mxu0 0.0
  %246 = vmatprep.subr.mxu0 0.0
  %247 = vmatpush1.msra.mxu0 0.0
  %248 = vmatprep.subr.mxu0 0.0
  %249 = vmatpush1.msra.mxu0 0.0
  %250 = vmatprep.subr.mxu0 0.0
  %251 = vmatpush1.msra.mxu0 0.0
  %252 = vmatprep.subr.mxu0 0.0
  %253 = vmatpush1.msra.mxu0 0.0
  %254 = vmatprep.subr.mxu0 0.0
  %255 = vmatpush1.msra.mxu0 0.0
  %256 = vmatprep.subr.mxu0 0.0
  %257 = vmatpush1.msra.mxu0 0.0
  %258 = vmatprep.subr.mxu0 0.0
  %259 = vmatpush1.msra.mxu0 0.0
  %260 = vmatprep.subr.mxu0 0.0
  %261 = vmatpush1.msra.mxu0 0.0
  %262 = vmatprep.subr.mxu0 0.0
  %263 = vmatpush1.msra.mxu0 0.0
  %264 = vmatprep.subr.mxu0 0.0
  %265 = vmatpush1.msra.mxu0 0.0
  %266 = vmatprep.subr.mxu0 0.0
  %267 = vmatpush1.msra.mxu0 0.0
  %268 = vmatprep.subr.mxu0 0.0
  %269 = vmatpush1.msra.mxu0 0.0
  %270 = vmatprep.subr.mxu0 0.0
  %271 = vmatpush1.msra.mxu0 0.0
  %272 = vmatprep.subr.mxu0 0.0
  %273 = vmatpush1.msra.mxu0 0.0
  %274 = vmatprep.subr.mxu0 0.0
  %275 = vmatpush1.msra.mxu0 0.0
  %276 = vmatprep.subr.mxu0 0.0
  %277 = vmatpush1.msra.mxu0 0.0
  %278 = vmatprep.subr.mxu0 0.0
  %279 = vmatpush1.msra.mxu0 0.0
  %280 = vmatprep.subr.mxu0 0.0
  %281 = vmatpush1.msra.mxu0 0.0
  %282 = vmatprep.subr.mxu0 0.0
  %283 = vmatpush1.msra.mxu0 0.0
  %284 = vmatprep.subr.mxu0 0.0
  %285 = vmatpush1.msra.mxu0 0.0
  %286 = vmatprep.subr.mxu0 0.0
  %287 = vmatpush1.msra.mxu0 0.0
  %288 = vmatprep.subr.mxu0 0.0
  %289 = vmatpush1.msra.mxu0 0.0
  %290 = vmatprep.subr.mxu0 0.0
  %291 = vmatpush1.msra.mxu0 0.0
  %292 = vmatprep.subr.mxu0 0.0
  %293 = vmatpush1.msra.mxu0 0.0
  %294 = vmatprep.subr.mxu0 0.0
  %295 = vmatpush1.msra.mxu0 0.0
  %296 = vmatprep.mubr.f32.mxu0 0.0
  %297 = vmatmul.mubr.f32.gmra.mrb[0].mxu0 %v73
  %v298 = vpop.f32.mrb[0].mxu0
  %v299 = vadd.f32 0.0, %v298
  %v300 = vpop.f32.mrb[0].mxu0
  %301 = vmatprep.mubr.f32.mxu0 0.0
  %302 = vmatmul.mubr.f32.gmra.mrb[0].mxu0 %v76
  %v303 = vpop.f32.mrb[0].mxu0
  %v304 = vadd.f32 0.0, %v303
  %v305 = vpop.f32.mrb[0].mxu0
  %306 = vmatprep.mubr.f32.mxu0 0.0
  %307 = vmatmul.mubr.f32.gmra.mrb[0].mxu0 %v79
  %v308 = vpop.f32.mrb[0].mxu0
  %v309 = vadd.f32 0.0, %v308
  %v310 = vpop.f32.mrb[0].mxu0
  %311 = vmatprep.mubr.f32.mxu0 0.0
  %312 = vmatmul.mubr.f32.gmra.mrb[0].mxu0 %v82
  %v313 = vpop.f32.mrb[0].mxu0
  %v314 = vadd.f32 0.0, %v313
  %v315 = vpop.f32.mrb[0].mxu0
  %316 = vmatprep.mubr.f32.mxu0 0.0
  %317 = vmatmul.mubr.f32.gmra.mrb[0].mxu0 %v85
  %v318 = vpop.f32.mrb[0].mxu0
  %v319 = vadd.f32 0.0, %v318
  %v320 = vpop.f32.mrb[0].mxu0
  %321 = vmatprep.mubr.f32.mxu0 0.0
  %322 = vmatmul.mubr.f32.gmra.mrb[0].mxu0 %v88
  %v323 = vpop.f32.mrb[0].mxu0
  %v324 = vadd.f32 0.0, %v323
  %v325 = vpop.f32.mrb[0].mxu0
  %326 = vmatprep.mubr.f32.mxu0 0.0
  %327 = vmatmul.mubr.f32.gmra.mrb[0].mxu0 %v91
  %v328 = vpop.f32.mrb[0].mxu0
  %v329 = vadd.f32 0.0, %v328
  %v330 = vpop.f32.mrb[0].mxu0
  %331 = vmatprep.mubr.f32.mxu0 0.0
  %332 = vmatmul.mubr.f32.gmra.mrb[0].mxu0 %v94
  %v333 = vpop.f32.mrb[0].mxu0
  %v334 = vadd.f32 0.0, %v333
  %v335 = vpop.f32.mrb[0].mxu0
  %336 = vmatprep.mubr.f32.mxu0 0.0
  %337 = vmatmul.mubr.f32.gmra.mrb[0].mxu0 %v97
  %v338 = vpop.f32.mrb[0].mxu0
  %v339 = vadd.f32 0.0, %v338
  %v340 = vpop.f32.mrb[0].mxu0
  %341 = vmatprep.mubr.f32.mxu0 0.0
  %342 = vmatmul.mubr.f32.gmra.mrb[0].mxu0 %v100
  %v343 = vpop.f32.mrb[0].mxu0
  %v344 = vadd.f32 0.0, %v343
  %v345 = vpop.f32.mrb[0].mxu0
  %346 = vmatprep.mubr.f32.mxu0 0.0
  %347 = vmatmul.mubr.f32.gmra.mrb[0].mxu0 %v103
  %v348 = vpop.f32.mrb[0].mxu0
  %v349 = vadd.f32 0.0, %v348
  %v350 = vpop.f32.mrb[0].mxu0
  %351 = vmatprep.mubr.f32.mxu0 0.0
  %352 = vmatmul.mubr.f32.gmra.mrb[0].mxu0 %v106
  %v353 = vpop.f32.mrb[0].mxu0
  %v354 = vadd.f32 0.0, %v353
  %v355 = vpop.f32.mrb[0].mxu0
  %356 = vmatprep.mubr.f32.mxu0 0.0
  %357 = vmatmul.mubr.f32.gmra.mrb[0].mxu0 %v109
  %v358 = vpop.f32.mrb[0].mxu0
  %v359 = vadd.f32 0.0, %v358
  %v360 = vpop.f32.mrb[0].mxu0
  %361 = vmatprep.mubr.f32.mxu0 0.0
  %362 = vmatmul.mubr.f32.gmra.mrb[0].mxu0 %v112
  %v363 = vpop.f32.mrb[0].mxu0
  %v364 = vadd.f32 0.0, %v363
  %v365 = vpop.f32.mrb[0].mxu0
  %366 = vmatprep.mubr.f32.mxu0 0.0
  %367 = vmatmul.mubr.f32.gmra.mrb[0].mxu0 %v115
  %v368 = vpop.f32.mrb[0].mxu0
  %v369 = vadd.f32 0.0, %v368
  %v370 = vpop.f32.mrb[0].mxu0
  %371 = vmatprep.mubr.f32.mxu0 0.0
  %372 = vmatmul.mubr.f32.gmra.mrb[0].mxu0 %v118
  %v373 = vpop.f32.mrb[0].mxu0
  %v374 = vadd.f32 0.0, %v373
  %v375 = vpop.f32.mrb[0].mxu0
  %376 = vmatprep.mubr.f32.mxu0 0.0
  %377 = vmatmul.mubr.f32.gmra.mrb[0].mxu0 %v121
  %v378 = vpop.f32.mrb[0].mxu0
  %v379 = vadd.f32 0.0, %v378
  %v380 = vpop.f32.mrb[0].mxu0
  %381 = vmatprep.mubr.f32.mxu0 0.0
  %382 = vmatmul.mubr.f32.gmra.mrb[0].mxu0 %v124
  %v383 = vpop.f32.mrb[0].mxu0
  %v384 = vadd.f32 0.0, %v383
  %v385 = vpop.f32.mrb[0].mxu0
  %386 = vmatprep.mubr.f32.mxu0 0.0
  %387 = vmatmul.mubr.f32.gmra.mrb[0].mxu0 %v127
  %v388 = vpop.f32.mrb[0].mxu0
  %v389 = vadd.f32 0.0, %v388
  %v390 = vpop.f32.mrb[0].mxu0
  %391 = vmatprep.mubr.f32.mxu0 0.0
  %392 = vmatmul.mubr.f32.gmra.mrb[0].mxu0 %v130
  %v393 = vpop.f32.mrb[0].mxu0
  %v394 = vadd.f32 0.0, %v393
  %v395 = vpop.f32.mrb[0].mxu0
  %396 = vmatprep.mubr.f32.mxu0 0.0
  %397 = vmatmul.mubr.f32.gmra.mrb[0].mxu0 %v133
  %v398 = vpop.f32.mrb[0].mxu0
  %v399 = vadd.f32 0.0, %v398
  %v400 = vpop.f32.mrb[0].mxu0
  %401 = vmatprep.mubr.f32.mxu0 0.0
  %402 = vmatmul.mubr.f32.gmra.mrb[0].mxu0 %v136
  %v403 = vpop.f32.mrb[0].mxu0
  %v404 = vadd.f32 0.0, %v403
  %v405 = vpop.f32.mrb[0].mxu0
  %406 = vmatprep.mubr.f32.mxu0 0.0
  %407 = vmatmul.mubr.f32.gmra.mrb[0].mxu0 %v139
  %v408 = vpop.f32.mrb[0].mxu0
  %v409 = vadd.f32 0.0, %v408
  %v410 = vpop.f32.mrb[0].mxu0
  %411 = vmatprep.mubr.f32.mxu0 0.0
  %412 = vmatmul.mubr.f32.gmra.mrb[0].mxu0 %v142
  %v413 = vpop.f32.mrb[0].mxu0
  %v414 = vadd.f32 0.0, %v413
  %v415 = vpop.f32.mrb[0].mxu0
  %416 = vmatprep.mubr.f32.mxu0 0.0
  %417 = vmatmul.mubr.f32.gmra.mrb[0].mxu0 %v145
  %v418 = vpop.f32.mrb[0].mxu0
  %v419 = vadd.f32 0.0, %v418
  %v420 = vpop.f32.mrb[0].mxu0
  %421 = vmatprep.mubr.f32.mxu0 0.0
  %422 = vmatmul.mubr.f32.gmra.mrb[0].mxu0 %v148
  %v423 = vpop.f32.mrb[0].mxu0
  %v424 = vadd.f32 0.0, %v423
  %v425 = vpop.f32.mrb[0].mxu0
  %426 = vmatprep.mubr.f32.mxu0 0.0
  %427 = vmatmul.mubr.f32.gmra.mrb[0].mxu0 %v151
  %v428 = vpop.f32.mrb[0].mxu0
  %v429 = vadd.f32 0.0, %v428
  %v430 = vpop.f32.mrb[0].mxu0
  %431 = vmatprep.mubr.f32.mxu0 0.0
  %432 = vmatmul.mubr.f32.gmra.mrb[0].mxu0 %v154
  %v433 = vpop.f32.mrb[0].mxu0
  %v434 = vadd.f32 0.0, %v433
  %v435 = vpop.f32.mrb[0].mxu0
  %436 = vmatprep.mubr.f32.mxu0 0.0
  %437 = vmatmul.mubr.f32.gmra.mrb[0].mxu0 %v157
  %v438 = vpop.f32.mrb[0].mxu0
  %v439 = vadd.f32 0.0, %v438
  %v440 = vpop.f32.mrb[0].mxu0
  %441 = vmatprep.mubr.f32.mxu0 0.0
  %442 = vmatmul.mubr.f32.gmra.mrb[0].mxu0 %v160
  %v443 = vpop.f32.mrb[0].mxu0
  %v444 = vadd.f32 0.0, %v443
  %v445 = vpop.f32.mrb[0].mxu0
  %446 = vmatprep.mubr.f32.mxu0 0.0
  %447 = vmatmul.mubr.f32.gmra.mrb[0].mxu0 %v163
  %v448 = vpop.f32.mrb[0].mxu0
  %v449 = vadd.f32 0.0, %v448
  %v450 = vpop.f32.mrb[0].mxu0
  %451 = vmatprep.mubr.f32.mxu0 0.0
  %452 = vmatmul.mubr.f32.gmra.mrb[0].mxu0 %v166
  %v453 = vpop.f32.mrb[0].mxu0
  %v454 = vadd.f32 0.0, %v453
  %v455 = vpop.f32.mrb[0].mxu0
  %456 = vmatprep.mubr.f32.mxu0 0.0
  %457 = vmatmul.mubr.f32.gmra.mrb[0].mxu0 %v169
  %v458 = vpop.f32.mrb[0].mxu0
  %v459 = vadd.f32 0.0, %v458
  %v460 = vpop.f32.mrb[0].mxu0
  %461 = vmatprep.mubr.f32.mxu0 0.0
  %462 = vmatmul.mubr.f32.gmra.mrb[0].mxu0 %v172
  %v463 = vpop.f32.mrb[0].mxu0
  %v464 = vadd.f32 0.0, %v463
  %v465 = vpop.f32.mrb[0].mxu0
  %466 = vmatprep.mubr.f32.mxu0 0.0
  %467 = vmatmul.mubr.f32.gmra.mrb[0].mxu0 %v175
  %v468 = vpop.f32.mrb[0].mxu0
  %v469 = vadd.f32 0.0, %v468
  %v470 = vpop.f32.mrb[0].mxu0
  %471 = vmatprep.mubr.f32.mxu0 0.0
  %472 = vmatmul.mubr.f32.gmra.mrb[0].mxu0 %v178
  %v473 = vpop.f32.mrb[0].mxu0
  %v474 = vadd.f32 0.0, %v473
  %v475 = vpop.f32.mrb[0].mxu0
  %476 = vmatprep.mubr.f32.mxu0 0.0
  %477 = vmatmul.mubr.f32.gmra.mrb[0].mxu0 %v181
  %v478 = vpop.f32.mrb[0].mxu0
  %v479 = vadd.f32 0.0, %v478
  %v480 = vpop.f32.mrb[0].mxu0
  %481 = vmatprep.mubr.f32.mxu0 0.0
  %482 = vmatmul.mubr.f32.gmra.mrb[0].mxu0 %v184
  %v483 = vpop.f32.mrb[0].mxu0
  %v484 = vadd.f32 0.0, %v483
  %v485 = vpop.f32.mrb[0].mxu0
  %486 = vmatprep.mubr.f32.mxu0 0.0
  %487 = vmatmul.mubr.f32.gmra.mrb[0].mxu0 %v187
  %v488 = vpop.f32.mrb[0].mxu0
  %v489 = vadd.f32 0.0, %v488
  %v490 = vpop.f32.mrb[0].mxu0
  %491 = vmatprep.mubr.f32.mxu0 0.0
  %492 = vmatmul.mubr.f32.gmra.mrb[0].mxu0 %v190
  %v493 = vpop.f32.mrb[0].mxu0
  %v494 = vadd.f32 0.0, %v493
  %v495 = vpop.f32.mrb[0].mxu0
  %496 = vmatprep.mubr.f32.mxu0 0.0
  %497 = vmatmul.mubr.f32.gmra.mrb[0].mxu0 %v193
  %v498 = vpop.f32.mrb[0].mxu0
  %v499 = vadd.f32 0.0, %v498
  %v500 = vpop.f32.mrb[0].mxu0
  %501 = vmatprep.mubr.f32.mxu0 0.0
  %502 = vmatmul.mubr.f32.gmra.mrb[0].mxu0 %v196
  %v503 = vpop.f32.mrb[0].mxu0
  %v504 = vadd.f32 0.0, %v503
  %v505 = vpop.f32.mrb[0].mxu0
  %506 = vmatprep.mubr.f32.mxu0 0.0
  %507 = vmatmul.mubr.f32.gmra.mrb[0].mxu0 %v199
  %v508 = vpop.f32.mrb[0].mxu0
  %v509 = vadd.f32 0.0, %v508
  %v510 = vpop.f32.mrb[0].mxu0
  %511 = vmatprep.mubr.f32.mxu0 0.0
  %512 = vmatmul.mubr.f32.gmra.mrb[0].mxu0 %v202
  %v513 = vpop.f32.mrb[0].mxu0
  %v514 = vadd.f32 0.0, %v513
  %v515 = vpop.f32.mrb[0].mxu0
  %516 = vmatprep.mubr.f32.mxu0 0.0
  %517 = vmatmul.mubr.f32.gmra.mrb[0].mxu0 %v205
  %v518 = vpop.f32.mrb[0].mxu0
  %v519 = vadd.f32 0.0, %v518
  %v520 = vpop.f32.mrb[0].mxu0
  %521 = vmatprep.mubr.f32.mxu0 0.0
  %522 = vmatmul.mubr.f32.gmra.mrb[0].mxu0 %v208
  %v523 = vpop.f32.mrb[0].mxu0
  %v524 = vadd.f32 0.0, %v523
  %v525 = vpop.f32.mrb[0].mxu0
  %526 = vmatprep.mubr.f32.mxu0 0.0
  %527 = vmatmul.mubr.f32.gmra.mrb[0].mxu0 %v211
  %v528 = vpop.f32.mrb[0].mxu0
  %v529 = vadd.f32 0.0, %v528
  %v530 = vpop.f32.mrb[0].mxu0
  %531 = vmatprep.mubr.f32.mxu0 0.0
  %532 = vmatmul.mubr.f32.gmra.mrb[0].mxu0 %v214
  %v533 = vpop.f32.mrb[0].mxu0
  %v534 = vadd.f32 0.0, %v533
  %v535 = vpop.f32.mrb[0].mxu0
  %536 = vmatprep.mubr.f32.mxu0 0.0
  %537 = vmatmul.mubr.f32.gmra.mrb[0].mxu0 %v217
  %v538 = vpop.f32.mrb[0].mxu0
  %v539 = vadd.f32 0.0, %v538
  %v540 = vpop.f32.mrb[0].mxu0
  %541 = vmatprep.mubr.f32.mxu0 0.0
  %542 = vmatmul.mubr.f32.gmra.mrb[0].mxu0 %v220
  %v543 = vpop.f32.mrb[0].mxu0
  %v544 = vadd.f32 0.0, %v543
  %v545 = vpop.f32.mrb[0].mxu0
  %546 = vmatprep.mubr.f32.mxu0 0.0
  %547 = vmatmul.mubr.f32.gmra.mrb[0].mxu0 %v223
  %v548 = vpop.f32.mrb[0].mxu0
  %v549 = vadd.f32 0.0, %v548
  %v550 = vpop.f32.mrb[0].mxu0
  %551 = vmatprep.mubr.f32.mxu0 0.0
  %552 = vmatmul.mubr.f32.gmra.mrb[0].mxu0 %v226
  %v553 = vpop.f32.mrb[0].mxu0
  %v554 = vadd.f32 0.0, %v553
  %v555 = vpop.f32.mrb[0].mxu0
  %556 = vdwg.mxu0
  %v557 = vmax.f32 %v299, %v364
  %v558 = vmax.f32 %v557, %v429
  %v559 = vmax.f32 %v558, %v494
  %v560 = vmax.f32 %v304, %v369
  %v561 = vmax.f32 %v560, %v434
  %v562 = vmax.f32 %v561, %v499
  %v563 = vmax.f32 %v309, %v374
  %v564 = vmax.f32 %v563, %v439
  %v565 = vmax.f32 %v564, %v504
  %v566 = vmax.f32 %v314, %v379
  %v567 = vmax.f32 %v566, %v444
  %v568 = vmax.f32 %v567, %v509
  %v569 = vmax.f32 %v319, %v384
  %v570 = vmax.f32 %v569, %v449
  %v571 = vmax.f32 %v570, %v514
  %v572 = vmax.f32 %v324, %v389
  %v573 = vmax.f32 %v572, %v454
  %v574 = vmax.f32 %v573, %v519
  %v575 = vmax.f32 %v329, %v394
  %v576 = vmax.f32 %v575, %v459
  %v577 = vmax.f32 %v576, %v524
  %v578 = vmax.f32 %v334, %v399
  %v579 = vmax.f32 %v578, %v464
  %v580 = vmax.f32 %v579, %v529
  %v581 = vmax.f32 %v339, %v404
  %v582 = vmax.f32 %v581, %v469
  %v583 = vmax.f32 %v582, %v534
  %v584 = vmax.f32 %v344, %v409
  %v585 = vmax.f32 %v584, %v474
  %v586 = vmax.f32 %v585, %v539
  %v587 = vmax.f32 %v349, %v414
  %v588 = vmax.f32 %v587, %v479
  %v589 = vmax.f32 %v588, %v544
  %v590 = vmax.f32 %v354, %v419
  %v591 = vmax.f32 %v590, %v484
  %v592 = vmax.f32 %v591, %v549
  %v593 = vmax.f32 %v359, %v424
  %v594 = vmax.f32 %v593, %v489
  %v595 = vmax.f32 %v594, %v554
  %v596 = vld [vmem:[%s2] sm:$0x1]
  %v598 = vlaneseq
  %v599 = vshrl.u32 %v598, 7
  %v600 = vsub.s32 0, %v599
  %v601 = vrot.slane %v596, %v600
  %v603 = vadd.f32 %v559, %v601
  %v604 = vadd.f32 %v562, %v601
  %v605 = vadd.f32 %v565, %v601
  %v606 = vadd.f32 %v568, %v601
  %v607 = vadd.f32 %v571, %v601
  %v608 = vadd.f32 %v574, %v601
  %v609 = vadd.f32 %v577, %v601
  %v610 = vadd.f32 %v580, %v601
  %v611 = vadd.f32 %v583, %v601
  %v612 = vadd.f32 %v586, %v601
  %v613 = vadd.f32 %v589, %v601
  %v614 = vadd.f32 %v592, %v601
  %v615 = vadd.f32 %v595, %v601
  %v616 = vmax.f32 %v603, 0.0
  %v617 = vmax.f32 %v604, 0.0
  %v618 = vmax.f32 %v605, 0.0
  %v619 = vmax.f32 %v606, 0.0
  %v620 = vmax.f32 %v607, 0.0
  %v621 = vmax.f32 %v608, 0.0
  %v622 = vmax.f32 %v609, 0.0
  %v623 = vmax.f32 %v610, 0.0
  %v624 = vmax.f32 %v611, 0.0
  %v625 = vmax.f32 %v612, 0.0
  %v626 = vmax.f32 %v613, 0.0
  %v627 = vmax.f32 %v614, 0.0
  %v628 = vmax.f32 %v615, 0.0
  %629 = vst [vmem:[%s3] sm:$0xff] %v616
  %630 = vst [vmem:[%s3 + $0x8] sm:$0xff] %v617
  %631 = vst [vmem:[%s3 + $0x10] sm:$0xff] %v618
  %632 = vst [vmem:[%s3 + $0x18] sm:$0xff] %v619
  %633 = vst [vmem:[%s3 + $0x20] sm:$0xff] %v620
  %634 = vst [vmem:[%s3 + $0x28] sm:$0xff] %v621
  %635 = vst [vmem:[%s3 + $0x30] sm:$0xff] %v622
  %636 = vst [vmem:[%s3 + $0x38] sm:$0xff] %v623
  %637 = vst [vmem:[%s3 + $0x40] sm:$0xff] %v624
  %638 = vst [vmem:[%s3 + $0x48] sm:$0xff] %v625
  %639 = vst [vmem:[%s3 + $0x50] sm:$0xff] %v626
  %640 = vst [vmem:[%s3 + $0x58] sm:$0xff] %v627
  %641 = vst [vmem:[%s3 + $0x60] sm:$0xff] %v628
  // Predicated region
  $region14: #{cnn_forward.4} parent=0 // pred_check
    _
  $region15: #{cnn_forward.4} parent=0 // pred_check_branch
    %643 = sbr.rel (0) target = $region17
  $region16: #{cnn_forward.4} parent=0 // pred_region
    _
  $region17: #{cnn_forward.4} parent=0 // pred_fallthru
    _
  // Predicated region
  $region18: #{cnn_forward.4} parent=0 // pred_check
    _
  $region19: #{cnn_forward.4} parent=0 // pred_check_branch
    %645 = sbr.rel (0) target = $region21
  $region20: #{cnn_forward.4} parent=0 // pred_region
    _
  $region21: #{cnn_forward.4} parent=0 // pred_fallthru
    _

// kernel: cnn_forward.5
$region0: #{cnn_forward.5}
  #allocation0 [shape = 'u32[]', space=smem, size = 0x4, offset = 0x4, fixed_abs, tag = 'smem constant byte address 0x4 - core index']
  #allocation1 [shape = 'u32[144,128]{1,0:T(1,128)}', space=vmem, size = 0x12000, scoped, tag = 'internal scratch']
  %s0 = inlined_call_operand.vmem [shape: f32[2,392], index: 0, kind: input, shape index: {}]
  %s1 = inlined_call_operand.vmem [shape: f32[392,128], index: 1, kind: input, shape index: {}]
  %s2 = inlined_call_operand.vmem [shape: f32[1,128], index: 2, kind: input, shape index: {}]
  %s3 = inlined_call_operand.vmem [shape: f32[128,128], index: 3, kind: input, shape index: {}]
  %s4 = inlined_call_operand.vmem [shape: f32[1,128], index: 4, kind: input, shape index: {}]
  %s5 = inlined_call_operand.hbm [shape: f32[2,128], index: 5, kind: output, shape index: {}]
  %s6 = sld [smem:[#allocation0]]
  $region30: #{cnn_forward.5} parent=0
    _
  %s8 = ssub.s32 1, %s6
  %s9 = scalar_select 0, %s8, %s6
  $region1: #{cnn_forward.5} parent=0
    #allocation2 [shape = 'u8[1024]{0}', space=vmem, size = 0x400, scoped, tag = 'output window, operand 0, single buffered']
    #allocation3 [shape = 's32[1]{0}', space=sflag, size = 0x4, scoped, tag = 'scoped memory for cnn_forward.5']
    %10 = vsyncpa [#allocation3], 0
    // Predicated region
    $region2: #{cnn_forward.5} parent=1 // pred_check
      _
    $region3: #{cnn_forward.5} parent=1 // pred_check_branch
      %12 = sbr.rel (0) target = $region5
    $region4: #{cnn_forward.5} parent=1 // pred_region
      _
    $region5: #{cnn_forward.5} parent=1 // pred_fallthru
      _
    // Predicated region
    $region6: #{cnn_forward.5} parent=1 // pred_check
      _
    $region7: #{cnn_forward.5} parent=1 // pred_check_branch
      %14 = sbr.rel (0) target = $region9
    $region8: #{cnn_forward.5} parent=1 // pred_region
      _
    $region9: #{cnn_forward.5} parent=1 // pred_fallthru
      _
    // Predicated region
    $region10: #{cnn_forward.5} parent=1 // pred_check
      _
    $region11: #{cnn_forward.5} parent=1 // pred_check_branch
      %16 = sbr.rel (0) target = $region13
    $region12: #{cnn_forward.5} parent=1 // pred_region
      _
    $region13: #{cnn_forward.5} parent=1 // pred_fallthru
      _
    // Predicated region
    $region14: #{cnn_forward.5} parent=1 // pred_check
      _
    $region15: #{cnn_forward.5} parent=1 // pred_check_branch
      %18 = sbr.rel (0) target = $region17
    $region16: #{cnn_forward.5} parent=1 // pred_region
      _
    $region17: #{cnn_forward.5} parent=1 // pred_fallthru
      _
    // Predicated region
    $region18: #{cnn_forward.5} parent=1 // pred_check
      _
    $region19: #{cnn_forward.5} parent=1 // pred_check_branch
      %20 = sbr.rel (0) target = $region21
    $region20: #{cnn_forward.5} parent=1 // pred_region
      _
    $region21: #{cnn_forward.5} parent=1 // pred_fallthru
      _
    %v21 = vld [vmem:[%s0] sm:$0xff]
    %v22 = vld [vmem:[%s1] sm:$0xff]
    %v23 = vld [vmem:[%s1 + $0x8] sm:$0xff]
    %v24 = vld [vmem:[%s1 + $0x10] sm:$0xff]
    %v25 = vld [vmem:[%s1 + $0x18] sm:$0xff]
    %v26 = vld [vmem:[%s1 + $0x20] sm:$0xff]
    %v27 = vld [vmem:[%s1 + $0x28] sm:$0xff]
    %v28 = vld [vmem:[%s1 + $0x30] sm:$0xff]
    %v29 = vld [vmem:[%s1 + $0x38] sm:$0xff]
    %v30 = vld [vmem:[%s1 + $0x40] sm:$0xff]
    %v31 = vld [vmem:[%s1 + $0x48] sm:$0xff]
    %v32 = vld [vmem:[%s1 + $0x50] sm:$0xff]
    %v33 = vld [vmem:[%s1 + $0x58] sm:$0xff]
    %v34 = vld [vmem:[%s1 + $0x60] sm:$0xff]
    %v35 = vld [vmem:[%s1 + $0x68] sm:$0xff]
    %v36 = vld [vmem:[%s1 + $0x70] sm:$0xff]
    %v37 = vld [vmem:[%s1 + $0x78] sm:$0xff]
    %v38 = vld [vmem:[%s1 + $0x80] sm:$0xff]
    %v39 = vld [vmem:[%s1 + $0x88] sm:$0xff]
    %v40 = vld [vmem:[%s1 + $0x90] sm:$0xff]
    %v41 = vld [vmem:[%s1 + $0x98] sm:$0xff]
    %v42 = vld [vmem:[%s1 + $0xa0] sm:$0xff]
    %v43 = vld [vmem:[%s1 + $0xa8] sm:$0xff]
    %v44 = vld [vmem:[%s1 + $0xb0] sm:$0xff]
    %v45 = vld [vmem:[%s1 + $0xb8] sm:$0xff]
    %v46 = vld [vmem:[%s1 + $0xc0] sm:$0xff]
    %v47 = vld [vmem:[%s1 + $0xc8] sm:$0xff]
    %v48 = vld [vmem:[%s1 + $0xd0] sm:$0xff]
    %v49 = vld [vmem:[%s1 + $0xd8] sm:$0xff]
    %v50 = vld [vmem:[%s1 + $0xe0] sm:$0xff]
    %v51 = vld [vmem:[%s1 + $0xe8] sm:$0xff]
    %v52 = vld [vmem:[%s1 + $0xf0] sm:$0xff]
    %v53 = vld [vmem:[%s1 + $0xf8] sm:$0xff]
    %v54 = vld [vmem:[%s1 + $0x100] sm:$0xff]
    %v55 = vld [vmem:[%s1 + $0x108] sm:$0xff]
    %v56 = vld [vmem:[%s1 + $0x110] sm:$0xff]
    %v57 = vld [vmem:[%s1 + $0x118] sm:$0xff]
    %v58 = vld [vmem:[%s1 + $0x120] sm:$0xff]
    %v59 = vld [vmem:[%s1 + $0x128] sm:$0xff]
    %v60 = vld [vmem:[%s1 + $0x130] sm:$0xff]
    %v61 = vld [vmem:[%s1 + $0x138] sm:$0xff]
    %v62 = vld [vmem:[%s1 + $0x140] sm:$0xff]
    %v63 = vld [vmem:[%s1 + $0x148] sm:$0xff]
    %v64 = vld [vmem:[%s1 + $0x150] sm:$0xff]
    %v65 = vld [vmem:[%s1 + $0x158] sm:$0xff]
    %v66 = vld [vmem:[%s1 + $0x160] sm:$0xff]
    %v67 = vld [vmem:[%s1 + $0x168] sm:$0xff]
    %v68 = vld [vmem:[%s1 + $0x170] sm:$0xff]
    %v69 = vld [vmem:[%s1 + $0x178] sm:$0xff]
    %v70 = vld [vmem:[%s1 + $0x180] sm:$0xff]
    %v71 = vld [vmem:[%s2] sm:$0x1]
    %v73 = vlaneseq
    %v74 = vshrl.u32 %v73, 7
    %v75 = vsub.s32 0, %v74
    %v76 = vrot.slane %v71, %v75
    %v79 = vcombine.high %v21, %v21
    %v81 = vunpack.c.l.s4 1983009808
    %v82 = vunpack.c.0.s8 %v81
    %v83 = vlaneseq
    %v84 = vshrl.u32 %v83, 7
    %v85 = vsub.s32 %v82, %v84
    %v86 = vrot.slane %v21, %v85
    %v88 = vunpack.c.l.s4 1983009808
    %v89 = vunpack.c.0.s8 %v88
    %v90 = vlaneseq
    %v91 = vshrl.u32 %v90, 7
    %v92 = vsub.s32 %v89, %v91
    %v93 = vrot.slane %v79, %v92
    %v94 = vcombine.high %v86, %v86
    %v95 = vcombine.high %v93, %v93
    %vm99 = vcmask 64512
    %v100 = vsel %vm99, %v95, 0
    %102 = vmatprep.subr.mxu0 0.0
    %103 = vmatpush1.msra.mxu0 %v22
    %104 = vmatprep.subr.mxu0 0.0
    %105 = vmatpush1.msra.mxu0 %v23
    %106 = vmatprep.subr.mxu0 0.0
    %107 = vmatpush1.msra.mxu0 %v24
    %108 = vmatprep.subr.mxu0 0.0
    %109 = vmatpush1.msra.mxu0 %v25
    %110 = vmatprep.subr.mxu0 0.0
    %111 = vmatpush1.msra.mxu0 %v26
    %112 = vmatprep.subr.mxu0 0.0
    %113 = vmatpush1.msra.mxu0 %v27
    %114 = vmatprep.subr.mxu0 0.0
    %115 = vmatpush1.msra.mxu0 %v28
    %116 = vmatprep.subr.mxu0 0.0
    %117 = vmatpush1.msra.mxu0 %v29
    %118 = vmatprep.subr.mxu0 0.0
    %119 = vmatpush1.msra.mxu0 %v30
    %120 = vmatprep.subr.mxu0 0.0
    %121 = vmatpush1.msra.mxu0 %v31
    %122 = vmatprep.subr.mxu0 0.0
    %123 = vmatpush1.msra.mxu0 %v32
    %124 = vmatprep.subr.mxu0 0.0
    %125 = vmatpush1.msra.mxu0 %v33
    %126 = vmatprep.subr.mxu0 0.0
    %127 = vmatpush1.msra.mxu0 %v34
    %128 = vmatprep.subr.mxu0 0.0
    %129 = vmatpush1.msra.mxu0 %v35
    %130 = vmatprep.subr.mxu0 0.0
    %131 = vmatpush1.msra.mxu0 %v36
    %132 = vmatprep.subr.mxu0 0.0
    %133 = vmatpush1.msra.mxu0 %v37
    %134 = vmatprep.subr.mxu0 0.0
    %135 = vmatpush1.msra.mxu0 %v38
    %136 = vmatprep.subr.mxu0 0.0
    %137 = vmatpush1.msra.mxu0 %v39
    %138 = vmatprep.subr.mxu0 0.0
    %139 = vmatpush1.msra.mxu0 %v40
    %140 = vmatprep.subr.mxu0 0.0
    %141 = vmatpush1.msra.mxu0 %v41
    %142 = vmatprep.subr.mxu0 0.0
    %143 = vmatpush1.msra.mxu0 %v42
    %144 = vmatprep.subr.mxu0 0.0
    %145 = vmatpush1.msra.mxu0 %v43
    %146 = vmatprep.subr.mxu0 0.0
    %147 = vmatpush1.msra.mxu0 %v44
    %148 = vmatprep.subr.mxu0 0.0
    %149 = vmatpush1.msra.mxu0 %v45
    %150 = vmatprep.subr.mxu0 0.0
    %151 = vmatpush1.msra.mxu0 %v46
    %152 = vmatprep.subr.mxu0 0.0
    %153 = vmatpush1.msra.mxu0 %v47
    %154 = vmatprep.subr.mxu0 0.0
    %155 = vmatpush1.msra.mxu0 %v48
    %156 = vmatprep.subr.mxu0 0.0
    %157 = vmatpush1.msra.mxu0 %v49
    %158 = vmatprep.subr.mxu0 0.0
    %159 = vmatpush1.msra.mxu0 %v50
    %160 = vmatprep.subr.mxu0 0.0
    %161 = vmatpush1.msra.mxu0 %v51
    %162 = vmatprep.subr.mxu0 0.0
    %163 = vmatpush1.msra.mxu0 %v52
    %164 = vmatprep.subr.mxu0 0.0
    %165 = vmatpush1.msra.mxu0 %v53
    %166 = vmatprep.mubr.f32.mxu0 %v94
    %167 = vmatmul.mubr.f32.gmra.mrb[0].mxu0 %v86
    %v168 = vpop.f32.mrb[0].mxu0
    %v169 = vadd.f32 %v76, %v168
    %v170 = vpop.f32.mrb[0].mxu0
    %171 = vdwg.mxu0
    %172 = vmatprep.subr.mxu0 0.0
    %173 = vmatpush1.msra.mxu0 %v54
    %174 = vmatprep.subr.mxu0 0.0
    %175 = vmatpush1.msra.mxu0 %v55
    %176 = vmatprep.subr.mxu0 0.0
    %177 = vmatpush1.msra.mxu0 %v56
    %178 = vmatprep.subr.mxu0 0.0
    %179 = vmatpush1.msra.mxu0 %v57
    %180 = vmatprep.subr.mxu0 0.0
    %181 = vmatpush1.msra.mxu0 %v58
    %182 = vmatprep.subr.mxu0 0.0
    %183 = vmatpush1.msra.mxu0 %v59
    %184 = vmatprep.subr.mxu0 0.0
    %185 = vmatpush1.msra.mxu0 %v60
    %186 = vmatprep.subr.mxu0 0.0
    %187 = vmatpush1.msra.mxu0 %v61
    %188 = vmatprep.subr.mxu0 0.0
    %189 = vmatpush1.msra.mxu0 %v62
    %190 = vmatprep.subr.mxu0 0.0
    %191 = vmatpush1.msra.mxu0 %v63
    %192 = vmatprep.subr.mxu0 0.0
    %193 = vmatpush1.msra.mxu0 %v64
    %194 = vmatprep.subr.mxu0 0.0
    %195 = vmatpush1.msra.mxu0 %v65
    %196 = vmatprep.subr.mxu0 0.0
    %197 = vmatpush1.msra.mxu0 %v66
    %198 = vmatprep.subr.mxu0 0.0
    %199 = vmatpush1.msra.mxu0 %v67
    %200 = vmatprep.subr.mxu0 0.0
    %201 = vmatpush1.msra.mxu0 %v68
    %202 = vmatprep.subr.mxu0 0.0
    %203 = vmatpush1.msra.mxu0 %v69
    %204 = vmatprep.subr.mxu0 0.0
    %205 = vmatpush1.msra.mxu0 %v70
    %206 = vmatprep.subr.mxu0 0.0
    %207 = vmatpush1.msra.mxu0 0.0
    %208 = vmatprep.subr.mxu0 0.0
    %209 = vmatpush1.msra.mxu0 0.0
    %210 = vmatprep.subr.mxu0 0.0
    %211 = vmatpush1.msra.mxu0 0.0
    %212 = vmatprep.subr.mxu0 0.0
    %213 = vmatpush1.msra.mxu0 0.0
    %214 = vmatprep.subr.mxu0 0.0
    %215 = vmatpush1.msra.mxu0 0.0
    %216 = vmatprep.subr.mxu0 0.0
    %217 = vmatpush1.msra.mxu0 0.0
    %218 = vmatprep.subr.mxu0 0.0
    %219 = vmatpush1.msra.mxu0 0.0
    %220 = vmatprep.subr.mxu0 0.0
    %221 = vmatpush1.msra.mxu0 0.0
    %222 = vmatprep.subr.mxu0 0.0
    %223 = vmatpush1.msra.mxu0 0.0
    %224 = vmatprep.subr.mxu0 0.0
    %225 = vmatpush1.msra.mxu0 0.0
    %226 = vmatprep.subr.mxu0 0.0
    %227 = vmatpush1.msra.mxu0 0.0
    %228 = vmatprep.subr.mxu0 0.0
    %229 = vmatpush1.msra.mxu0 0.0
    %230 = vmatprep.subr.mxu0 0.0
    %231 = vmatpush1.msra.mxu0 0.0
    %232 = vmatprep.subr.mxu0 0.0
    %233 = vmatpush1.msra.mxu0 0.0
    %234 = vmatprep.subr.mxu0 0.0
    %235 = vmatpush1.msra.mxu0 0.0
    %236 = vmatprep.mubr.f32.mxu0 %v100
    %237 = vmatmul.mubr.f32.gmra.mrb[0].mxu0 %v93
    %v238 = vpop.f32.mrb[0].mxu0
    %v239 = vadd.f32 %v169, %v238
    %v240 = vpop.f32.mrb[0].mxu0
    %241 = vdwg.mxu0
    %v242 = vmax.f32 %v239, 0.0
    %v243 = vld [vmem:[%s3] sm:$0xff]
    %v244 = vld [vmem:[%s3 + $0x8] sm:$0xff]
    %v245 = vld [vmem:[%s3 + $0x10] sm:$0xff]
    %v246 = vld [vmem:[%s3 + $0x18] sm:$0xff]
    %v247 = vld [vmem:[%s3 + $0x20] sm:$0xff]
    %v248 = vld [vmem:[%s3 + $0x28] sm:$0xff]
    %v249 = vld [vmem:[%s3 + $0x30] sm:$0xff]
    %v250 = vld [vmem:[%s3 + $0x38] sm:$0xff]
    %v251 = vld [vmem:[%s3 + $0x40] sm:$0xff]
    %v252 = vld [vmem:[%s3 + $0x48] sm:$0xff]
    %v253 = vld [vmem:[%s3 + $0x50] sm:$0xff]
    %v254 = vld [vmem:[%s3 + $0x58] sm:$0xff]
    %v255 = vld [vmem:[%s3 + $0x60] sm:$0xff]
    %v256 = vld [vmem:[%s3 + $0x68] sm:$0xff]
    %v257 = vld [vmem:[%s3 + $0x70] sm:$0xff]
    %v258 = vld [vmem:[%s3 + $0x78] sm:$0xff]
    %v259 = vld [vmem:[%s4] sm:$0x1]
    %v261 = vlaneseq
    %v262 = vshrl.u32 %v261, 7
    %v263 = vsub.s32 0, %v262
    %v264 = vrot.slane %v259, %v263
    %266 = vmatprep.subr.mxu0 0.0
    %267 = vmatpush1.msra.mxu0 %v243
    %268 = vmatprep.subr.mxu0 0.0
    %269 = vmatpush1.msra.mxu0 %v244
    %270 = vmatprep.subr.mxu0 0.0
    %271 = vmatpush1.msra.mxu0 %v245
    %272 = vmatprep.subr.mxu0 0.0
    %273 = vmatpush1.msra.mxu0 %v246
    %274 = vmatprep.subr.mxu0 0.0
    %275 = vmatpush1.msra.mxu0 %v247
    %276 = vmatprep.subr.mxu0 0.0
    %277 = vmatpush1.msra.mxu0 %v248
    %278 = vmatprep.subr.mxu0 0.0
    %279 = vmatpush1.msra.mxu0 %v249
    %280 = vmatprep.subr.mxu0 0.0
    %281 = vmatpush1.msra.mxu0 %v250
    %282 = vmatprep.subr.mxu0 0.0
    %283 = vmatpush1.msra.mxu0 %v251
    %284 = vmatprep.subr.mxu0 0.0
    %285 = vmatpush1.msra.mxu0 %v252
    %286 = vmatprep.subr.mxu0 0.0
    %287 = vmatpush1.msra.mxu0 %v253
    %288 = vmatprep.subr.mxu0 0.0
    %289 = vmatpush1.msra.mxu0 %v254
    %290 = vmatprep.subr.mxu0 0.0
    %291 = vmatpush1.msra.mxu0 %v255
    %292 = vmatprep.subr.mxu0 0.0
    %293 = vmatpush1.msra.mxu0 %v256
    %294 = vmatprep.subr.mxu0 0.0
    %295 = vmatpush1.msra.mxu0 %v257
    %296 = vmatprep.subr.mxu0 0.0
    %297 = vmatpush1.msra.mxu0 %v258
    %298 = vmatprep.subr.mxu0 0.0
    %299 = vmatpush1.msra.mxu0 0.0
    %300 = vmatprep.subr.mxu0 0.0
    %301 = vmatpush1.msra.mxu0 0.0
    %302 = vmatprep.subr.mxu0 0.0
    %303 = vmatpush1.msra.mxu0 0.0
    %304 = vmatprep.subr.mxu0 0.0
    %305 = vmatpush1.msra.mxu0 0.0
    %306 = vmatprep.subr.mxu0 0.0
    %307 = vmatpush1.msra.mxu0 0.0
    %308 = vmatprep.subr.mxu0 0.0
    %309 = vmatpush1.msra.mxu0 0.0
    %310 = vmatprep.subr.mxu0 0.0
    %311 = vmatpush1.msra.mxu0 0.0
    %312 = vmatprep.subr.mxu0 0.0
    %313 = vmatpush1.msra.mxu0 0.0
    %314 = vmatprep.subr.mxu0 0.0
    %315 = vmatpush1.msra.mxu0 0.0
    %316 = vmatprep.subr.mxu0 0.0
    %317 = vmatpush1.msra.mxu0 0.0
    %318 = vmatprep.subr.mxu0 0.0
    %319 = vmatpush1.msra.mxu0 0.0
    %320 = vmatprep.subr.mxu0 0.0
    %321 = vmatpush1.msra.mxu0 0.0
    %322 = vmatprep.subr.mxu0 0.0
    %323 = vmatpush1.msra.mxu0 0.0
    %324 = vmatprep.subr.mxu0 0.0
    %325 = vmatpush1.msra.mxu0 0.0
    %326 = vmatprep.subr.mxu0 0.0
    %327 = vmatpush1.msra.mxu0 0.0
    %328 = vmatprep.subr.mxu0 0.0
    %329 = vmatpush1.msra.mxu0 0.0
    %330 = vmatprep.mubr.f32.mxu0 0.0
    %331 = vmatmul.mubr.f32.gmra.mrb[0].mxu0 %v242
    %v332 = vpop.f32.mrb[0].mxu0
    %v333 = vadd.f32 %v264, %v332
    %v334 = vpop.f32.mrb[0].mxu0
    %335 = vdwg.mxu0
    %336 = vst [vmem:[#allocation2] sm:$0x3] %v333
    // Predicated region
    $region22: #{cnn_forward.5} parent=1 // pred_check
      _
    $region23: #{cnn_forward.5} parent=1 // pred_check_branch
      %338 = sbr.rel (0) target = $region25
    $region24: #{cnn_forward.5} parent=1 // pred_region
      %s340 = ssub.s32 32, 32
      %341 = vsyncadd [#allocation3], %s340
      %s343 = sshll.u32 [#allocation2], 4
      %s344 = int_to_ptr.vmem [resolvable:$true] %s343
      %346 = dma.vmem_to_hbm [thread:$0]  %s344, 32, %s5, [#allocation3]
    $region25: #{cnn_forward.5} parent=1 // pred_fallthru
      _
    // Predicated region
    $region26: #{cnn_forward.5} parent=1 // pred_check
      _
    $region27: #{cnn_forward.5} parent=1 // pred_check_branch
      %348 = sbr.rel (0) target = $region29
    $region28: #{cnn_forward.5} parent=1 // pred_region
      %349 = dma.done [#allocation3], 32
    $region29: #{cnn_forward.5} parent=1 // pred_fallthru
      _
    %350 = vsyncpa [#allocation3], 1

</llo_original>
